<compile_context>
chip_gen: v7x
topology: tpu7x:2x2x1
jax: 0.10.0
libtpu: 0.0.40
codegen_flags: <defaults>
</compile_context>

<pallas_src>
import functools

import jax
import jax.numpy as jnp
from jax.experimental import pallas as pl
from jax.experimental.pallas import tpu as pltpu

_LANE = 128


def _round_up(x, m):
    return ((x + m - 1) // m) * m


# ----------------------------- Pallas kernel -----------------------------

def _fused_mlp_kernel(*refs):
    """One grid step: push a (TILE_N, Fin) row-tile through the whole MLP.

    refs = (x_ref, w0, b0, w1, b1, ..., wL, bL, o_ref)
    Weights are stored (in_features, out_features); biases are (1, out).
    tanh on every layer except the last (matches Net.forward).
    """
    x_ref, o_ref = refs[0], refs[-1]
    wb = refs[1:-1]
    n_layers = len(wb) // 2

    a = x_ref[...]
    for i in range(n_layers):
        w = wb[2 * i][...]
        b = wb[2 * i + 1][...]          # (1, Fout) -> implicit broadcast add
        a = jnp.dot(a, w, preferred_element_type=jnp.float32) + b
        if i < n_layers - 1:
            a = jnp.tanh(a)
    o_ref[...] = a.astype(o_ref.dtype)


# -------------------------- parameter construction -----------------------

def init_net_params(layers, key):
    """Xavier-normal weights (gain=1.0), zero biases — matches the torch init."""
    params = []
    for i in range(len(layers) - 1):
        fan_in, fan_out = layers[i], layers[i + 1]
        key, sub = jax.random.split(key)
        std = (2.0 / (fan_in + fan_out)) ** 0.5
        # stored as (in_features, out_features) so the kernel does x @ W
        w = std * jax.random.normal(sub, (fan_in, fan_out), dtype=jnp.float32)
        b = jnp.zeros((1, fan_out), dtype=jnp.float32)
        params.append((w, b))
    return params


# ------------------------------- forward ---------------------------------

@functools.partial(jax.jit, static_argnames=("tile_n",))
def net_forward(params, x, *, tile_n=512):
    """Semantics of Net.forward: tanh on all layers except the last."""
    n, fin = x.shape
    fout = params[-1][0].shape[1]

    # Lane-dense final store: zero-pad last layer's (W, b) to 128 output cols.
    out_pad = _round_up(fout, _LANE)
    w_last, b_last = params[-1]
    w_last = jnp.pad(w_last, ((0, 0), (0, out_pad - fout)))
    b_last = jnp.pad(b_last, ((0, 0), (0, out_pad - fout)))
    padded_params = list(params[:-1]) + [(w_last, b_last)]

    # Row tiling: clamp the tile for tiny inputs, pad N to a tile multiple.
    tile = min(tile_n, _round_up(n, 8))
    padded_n = _round_up(n, tile)
    if padded_n != n:
        x = jnp.pad(x, ((0, padded_n - n), (0, 0)))
    grid = (padded_n // tile,)

    flat_wb = []
    wb_specs = []
    for w, b in padded_params:
        flat_wb.extend((w, b))
        # Full-array blocks + constant index_map => VMEM-resident across steps.
        wb_specs.append(pl.BlockSpec(w.shape, lambda i: (0, 0)))
        wb_specs.append(pl.BlockSpec(b.shape, lambda i: (0, 0)))

    in_specs = [pl.BlockSpec((tile, fin), lambda i: (i, 0))] + wb_specs
    out_specs = pl.BlockSpec((tile, out_pad), lambda i: (i, 0))

    # Advisory cost estimate for XLA scheduling around the custom call.
    dims = [w.shape for w, _ in padded_params]
    flops = 2 * padded_n * sum(ki * ko for ki, ko in dims)
    transcendentals = padded_n * sum(ko for _, ko in dims[:-1])
    param_bytes = sum((w.size + b.size) * 4 for w, b in padded_params)
    bytes_accessed = 4 * padded_n * (fin + out_pad) + param_bytes

    y = pl.pallas_call(
        _fused_mlp_kernel,
        out_shape=jax.ShapeDtypeStruct((padded_n, out_pad), jnp.float32),
        grid=grid,
        in_specs=in_specs,
        out_specs=out_specs,
        compiler_params=pltpu.CompilerParams(
            dimension_semantics=("parallel",)),
        cost_estimate=pl.CostEstimate(
            flops=flops,
            transcendentals=transcendentals,
            bytes_accessed=bytes_accessed),
    )(x, *flat_wb)

    return y[:n, :fout]


# --------------------------------- main -----------------------------------

if __name__ == "__main__":
    # Typical lid-driven-cavity PINN config: (x, y) in, (u, v, p) out.
    layers = [2, 32, 32, 32, 3]
    n_points = 1000          # small demo batch of collocation points
    tile_n = 512             # exercises the row grid (2 tiles) + N padding

    key = jax.random.PRNGKey(0)
    key, pkey, xkey = jax.random.split(key, 3)

    params = init_net_params(layers, pkey)
    x = jax.random.normal(xkey, (n_points, layers[0]), dtype=jnp.float32)

    out = net_forward(params, x, tile_n=tile_n)
    out = jax.block_until_ready(out)

    # pure-JAX reference check
    ref = x
    for i, (w, b) in enumerate(params):
        ref = ref @ w + b
        if i < len(params) - 1:
            ref = jnp.tanh(ref)

    assert out.shape == (n_points, layers[-1])
    assert jnp.allclose(out, ref, atol=1e-5, rtol=1e-5), float(
        jnp.max(jnp.abs(out - ref)))

    print("KERNEL_OK")
</pallas_src>

<mosaic_0001>
module attributes {stable_mosaic.version = 11 : i64} {
  func.func @_fused_mlp_kernel(%arg0: i32, %arg1: memref<512x2xf32, #tpu.memory_space<vmem>>, %arg2: memref<2x32xf32, #tpu.memory_space<vmem>>, %arg3: memref<1x32xf32, #tpu.memory_space<vmem>>, %arg4: memref<32x32xf32, #tpu.memory_space<vmem>>, %arg5: memref<1x32xf32, #tpu.memory_space<vmem>>, %arg6: memref<32x32xf32, #tpu.memory_space<vmem>>, %arg7: memref<1x32xf32, #tpu.memory_space<vmem>>, %arg8: memref<32x128xf32, #tpu.memory_space<vmem>>, %arg9: memref<1x128xf32, #tpu.memory_space<vmem>>, %arg10: memref<512x128xf32, #tpu.memory_space<vmem>>) attributes {dimension_semantics = [#tpu.dimension_semantics<parallel>], iteration_bounds = array<i64: 2>, scalar_prefetch = 0 : i64, scratch_operands = 0 : i64, tpu.core_type = #tpu.core_type<tc>, window_params = [{transform_indices = @transform_0, window_bounds = array<i64: 512, 2>}, {pipeline_mode = #tpu.pipeline_mode<synchronous>, transform_indices = @transform_1, window_bounds = array<i64: 2, 32>}, {pipeline_mode = #tpu.pipeline_mode<synchronous>, transform_indices = @transform_2, window_bounds = array<i64: 1, 32>}, {pipeline_mode = #tpu.pipeline_mode<synchronous>, transform_indices = @transform_3, window_bounds = array<i64: 32, 32>}, {pipeline_mode = #tpu.pipeline_mode<synchronous>, transform_indices = @transform_4, window_bounds = array<i64: 1, 32>}, {pipeline_mode = #tpu.pipeline_mode<synchronous>, transform_indices = @transform_5, window_bounds = array<i64: 32, 32>}, {pipeline_mode = #tpu.pipeline_mode<synchronous>, transform_indices = @transform_6, window_bounds = array<i64: 1, 32>}, {pipeline_mode = #tpu.pipeline_mode<synchronous>, transform_indices = @transform_7, window_bounds = array<i64: 32, 128>}, {pipeline_mode = #tpu.pipeline_mode<synchronous>, transform_indices = @transform_8, window_bounds = array<i64: 1, 128>}, {transform_indices = @transform_9, window_bounds = array<i64: 512, 128>}]} {
    %c0 = arith.constant 0 : index
    %c0_0 = arith.constant 0 : index
    %0 = vector.load %arg1[%c0, %c0_0] : memref<512x2xf32, #tpu.memory_space<vmem>>, vector<512x2xf32>
    %c0_1 = arith.constant 0 : index
    %c0_2 = arith.constant 0 : index
    %1 = vector.load %arg2[%c0_1, %c0_2] : memref<2x32xf32, #tpu.memory_space<vmem>>, vector<2x32xf32>
    %c0_3 = arith.constant 0 : index
    %c0_4 = arith.constant 0 : index
    %2 = vector.load %arg3[%c0_3, %c0_4] : memref<1x32xf32, #tpu.memory_space<vmem>>, vector<1x32xf32>
    %cst = arith.constant dense<0.000000e+00> : vector<512x32xf32>
    %3 = tpu.matmul %0, %1, %cst {dimension_numbers = #tpu.dot_dimension_numbers<[1], [0], [0], [1], [0, 0, 1, 1], [], []>} : vector<512x2xf32>, vector<2x32xf32>, vector<512x32xf32> -> vector<512x32xf32>
    %4 = vector.broadcast %2 : vector<1x32xf32> to vector<512x32xf32>
    %5 = arith.addf %3, %4 : vector<512x32xf32>
    %6 = math.tanh %5 : vector<512x32xf32>
    %c0_5 = arith.constant 0 : index
    %c0_6 = arith.constant 0 : index
    %7 = vector.load %arg4[%c0_5, %c0_6] : memref<32x32xf32, #tpu.memory_space<vmem>>, vector<32x32xf32>
    %c0_7 = arith.constant 0 : index
    %c0_8 = arith.constant 0 : index
    %8 = vector.load %arg5[%c0_7, %c0_8] : memref<1x32xf32, #tpu.memory_space<vmem>>, vector<1x32xf32>
    %cst_9 = arith.constant dense<0.000000e+00> : vector<512x32xf32>
    %9 = tpu.matmul %6, %7, %cst_9 {dimension_numbers = #tpu.dot_dimension_numbers<[1], [0], [0], [1], [0, 0, 1, 1], [], []>} : vector<512x32xf32>, vector<32x32xf32>, vector<512x32xf32> -> vector<512x32xf32>
    %10 = vector.broadcast %8 : vector<1x32xf32> to vector<512x32xf32>
    %11 = arith.addf %9, %10 : vector<512x32xf32>
    %12 = math.tanh %11 : vector<512x32xf32>
    %c0_10 = arith.constant 0 : index
    %c0_11 = arith.constant 0 : index
    %13 = vector.load %arg6[%c0_10, %c0_11] : memref<32x32xf32, #tpu.memory_space<vmem>>, vector<32x32xf32>
    %c0_12 = arith.constant 0 : index
    %c0_13 = arith.constant 0 : index
    %14 = vector.load %arg7[%c0_12, %c0_13] : memref<1x32xf32, #tpu.memory_space<vmem>>, vector<1x32xf32>
    %cst_14 = arith.constant dense<0.000000e+00> : vector<512x32xf32>
    %15 = tpu.matmul %12, %13, %cst_14 {dimension_numbers = #tpu.dot_dimension_numbers<[1], [0], [0], [1], [0, 0, 1, 1], [], []>} : vector<512x32xf32>, vector<32x32xf32>, vector<512x32xf32> -> vector<512x32xf32>
    %16 = vector.broadcast %14 : vector<1x32xf32> to vector<512x32xf32>
    %17 = arith.addf %15, %16 : vector<512x32xf32>
    %18 = math.tanh %17 : vector<512x32xf32>
    %c0_15 = arith.constant 0 : index
    %c0_16 = arith.constant 0 : index
    %19 = vector.load %arg8[%c0_15, %c0_16] : memref<32x128xf32, #tpu.memory_space<vmem>>, vector<32x128xf32>
    %c0_17 = arith.constant 0 : index
    %c0_18 = arith.constant 0 : index
    %20 = vector.load %arg9[%c0_17, %c0_18] : memref<1x128xf32, #tpu.memory_space<vmem>>, vector<1x128xf32>
    %cst_19 = arith.constant dense<0.000000e+00> : vector<512x128xf32>
    %21 = tpu.matmul %18, %19, %cst_19 {dimension_numbers = #tpu.dot_dimension_numbers<[1], [0], [0], [1], [0, 0, 1, 1], [], []>} : vector<512x32xf32>, vector<32x128xf32>, vector<512x128xf32> -> vector<512x128xf32>
    %22 = vector.broadcast %20 : vector<1x128xf32> to vector<512x128xf32>
    %23 = arith.addf %21, %22 : vector<512x128xf32>
    %c0_20 = arith.constant 0 : index
    %c0_21 = arith.constant 0 : index
    %24 = vector.load %arg10[%c0_20, %c0_21] : memref<512x128xf32, #tpu.memory_space<vmem>>, vector<512x128xf32>
    tpu.vector_store %arg10[%c0_20, %c0_21], %23 {strides = array<i32>} : memref<512x128xf32, #tpu.memory_space<vmem>>, vector<512x128xf32>,
    return
  }
  func.func @transform_0(%arg0: i32) -> (i32, i32) {
    %c0_i32 = arith.constant 0 : i32
    %c0_i32_0 = arith.constant 0 : i32
    return %arg0, %c0_i32 : i32, i32
  }
  func.func @transform_1(%arg0: i32) -> (i32, i32) {
    %c0_i32 = arith.constant 0 : i32
    %c0_i32_0 = arith.constant 0 : i32
    %c0_i32_1 = arith.constant 0 : i32
    return %c0_i32, %c0_i32_0 : i32, i32
  }
  func.func @transform_2(%arg0: i32) -> (i32, i32) {
    %c0_i32 = arith.constant 0 : i32
    %c0_i32_0 = arith.constant 0 : i32
    %c0_i32_1 = arith.constant 0 : i32
    return %c0_i32, %c0_i32_0 : i32, i32
  }
  func.func @transform_3(%arg0: i32) -> (i32, i32) {
    %c0_i32 = arith.constant 0 : i32
    %c0_i32_0 = arith.constant 0 : i32
    %c0_i32_1 = arith.constant 0 : i32
    return %c0_i32, %c0_i32_0 : i32, i32
  }
  func.func @transform_4(%arg0: i32) -> (i32, i32) {
    %c0_i32 = arith.constant 0 : i32
    %c0_i32_0 = arith.constant 0 : i32
    %c0_i32_1 = arith.constant 0 : i32
    return %c0_i32, %c0_i32_0 : i32, i32
  }
  func.func @transform_5(%arg0: i32) -> (i32, i32) {
    %c0_i32 = arith.constant 0 : i32
    %c0_i32_0 = arith.constant 0 : i32
    %c0_i32_1 = arith.constant 0 : i32
    return %c0_i32, %c0_i32_0 : i32, i32
  }
  func.func @transform_6(%arg0: i32) -> (i32, i32) {
    %c0_i32 = arith.constant 0 : i32
    %c0_i32_0 = arith.constant 0 : i32
    %c0_i32_1 = arith.constant 0 : i32
    return %c0_i32, %c0_i32_0 : i32, i32
  }
  func.func @transform_7(%arg0: i32) -> (i32, i32) {
    %c0_i32 = arith.constant 0 : i32
    %c0_i32_0 = arith.constant 0 : i32
    %c0_i32_1 = arith.constant 0 : i32
    return %c0_i32, %c0_i32_0 : i32, i32
  }
  func.func @transform_8(%arg0: i32) -> (i32, i32) {
    %c0_i32 = arith.constant 0 : i32
    %c0_i32_0 = arith.constant 0 : i32
    %c0_i32_1 = arith.constant 0 : i32
    return %c0_i32, %c0_i32_0 : i32, i32
  }
  func.func @transform_9(%arg0: i32) -> (i32, i32) {
    %c0_i32 = arith.constant 0 : i32
    %c0_i32_0 = arith.constant 0 : i32
    return %arg0, %c0_i32 : i32, i32
  }
}

</mosaic_0001>

<llo_original>
// kernel: net_forward.1
$region0: #{net_forward.1}
  #allocation0 [shape = 'u32[]', space=smem, size = 0x4, offset = 0x4, fixed_abs, tag = 'smem constant byte address 0x4 - core index']
  #allocation1 [shape = 'u32[144,128]{1,0:T(1,128)}', space=vmem, size = 0x12000, scoped, tag = 'internal scratch']
  %s0 = inlined_call_operand.vmem [shape: f32[1024,2], index: 0, kind: input, shape index: {}]
  %s1 = inlined_call_operand.vmem [shape: f32[2,32], index: 1, kind: input, shape index: {}]
  %s2 = inlined_call_operand.vmem [shape: f32[1,32], index: 2, kind: input, shape index: {}]
  %s3 = inlined_call_operand.vmem [shape: f32[32,32], index: 3, kind: input, shape index: {}]
  %s4 = inlined_call_operand.vmem [shape: f32[1,32], index: 4, kind: input, shape index: {}]
  %s5 = inlined_call_operand.vmem [shape: f32[32,32], index: 5, kind: input, shape index: {}]
  %s6 = inlined_call_operand.vmem [shape: f32[1,32], index: 6, kind: input, shape index: {}]
  %s7 = inlined_call_operand.vmem [shape: f32[32,128], index: 7, kind: input, shape index: {}]
  %s8 = inlined_call_operand.vmem [shape: f32[1,128], index: 8, kind: input, shape index: {}]
  %s9 = inlined_call_operand.vmem [shape: f32[1024,128], index: 9, kind: output, shape index: {}]
  %s10 = sld [smem:[#allocation0]]
  $region69: #{net_forward.1} parent=0
    _
  %s12 = ssub.s32 1, %s10
  %s13 = scalar_select 0, %s12, %s10
  loop: start=0, step=1, limit=4
  $region2: #{net_forward.1} parent=0 // loop_pre_header
    _
  $region3: #{net_forward.1} parent=0 // loop_header
    %s15 = sphi 0, %s19
    %p16 = scmp.ge.s32.totalorder %s15, 4
    %s25 = sphi 0, %s27
    %s28 = sphi 0, %s25
    %s29 = sphi 0, %s28
    %s45 = sphi 0, %s29
    %s49 = sphi 0, %s49
    %s51 = sphi 0, %s49
    %s52 = sphi 0, %s51
    %s66 = sphi 0, %s52
    %s70 = sphi 0, %s70
    %s72 = sphi 0, %s70
    %s73 = sphi 0, %s72
    %s87 = sphi 0, %s73
    %s91 = sphi 0, %s91
    %s93 = sphi 0, %s91
    %s94 = sphi 0, %s93
    %s108 = sphi 0, %s94
    %s112 = sphi 0, %s112
    %s114 = sphi 0, %s112
    %s115 = sphi 0, %s114
    %s129 = sphi 0, %s115
    %s133 = sphi 0, %s133
    %s135 = sphi 0, %s133
    %s136 = sphi 0, %s135
    %s150 = sphi 0, %s136
    %s154 = sphi 0, %s154
    %s156 = sphi 0, %s154
    %s157 = sphi 0, %s156
    %s171 = sphi 0, %s157
    %s175 = sphi 0, %s175
    %s177 = sphi 0, %s175
    %s178 = sphi 0, %s177
    %s192 = sphi 0, %s178
    %s196 = sphi 0, %s196
    %s198 = sphi 0, %s196
    %s199 = sphi 0, %s198
    %s213 = sphi 0, %s199
    %s219 = sphi 0, %s221
    %s222 = sphi 0, %s219
    %s223 = sphi 0, %s222
    %s239 = sphi 0, %s223
  $region4: #{net_forward.1} parent=0 // loop_header_branch
    %18 = sbr.rel (%p16) target = $region8
  $region5: #{net_forward.1} parent=0 // loop_body
    %s20 = ssub.s32 %s15, 1
    %s21 = ssub.s32 %s15, 2
    %s22 = sadd.s32 %s15, 1
    %s23 = ssub.s32 %s15, %s22
    %p24 = scmp.eq.s32.totalorder %s23, 0
    %s26 = sadd.s32 %s25, 1
    %s27 = scalar_select %p24, %s25, %s26
    %p30 = pneg %p24
    %p31 = scmp.eq.s32.totalorder %s15, 1
    %p32 = por %p30, %p31
    %p33 = scmp.ne.s32.totalorder %s25, %s28
    %p34 = scmp.eq.s32.totalorder %s15, 0
    %p35 = por %p33, %p34
    %p36 = scmp.ne.s32.totalorder %s25, %s28
    %p37 = scmp.eq.s32.totalorder %s20, 1
    %p38 = por %p36, %p37
    %p39 = scmp.ne.s32.totalorder %s28, %s29
    %p40 = scmp.eq.s32.totalorder %s20, 0
    %p41 = por %p39, %p40
    %p42 = scmp.ne.s32.totalorder %s28, %s29
    %p43 = scmp.eq.s32.totalorder %s21, 1
    %p44 = por %p42, %p43
    %p46 = scmp.ne.s32.totalorder %s29, %s45
    %p47 = scmp.eq.s32.totalorder %s21, 0
    %p48 = por %p46, %p47
    %s50 = sadd.s32 %s49, 1
    %p53 = scmp.eq.s32.totalorder %s15, 1
    %p54 = scmp.ne.s32.totalorder %s49, %s51
    %p55 = scmp.eq.s32.totalorder %s15, 0
    %p56 = por %p54, %p55
    %p57 = scmp.ne.s32.totalorder %s49, %s51
    %p58 = scmp.eq.s32.totalorder %s20, 1
    %p59 = por %p57, %p58
    %p60 = scmp.ne.s32.totalorder %s51, %s52
    %p61 = scmp.eq.s32.totalorder %s20, 0
    %p62 = por %p60, %p61
    %p63 = scmp.ne.s32.totalorder %s51, %s52
    %p64 = scmp.eq.s32.totalorder %s21, 1
    %p65 = por %p63, %p64
    %p67 = scmp.ne.s32.totalorder %s52, %s66
    %p68 = scmp.eq.s32.totalorder %s21, 0
    %p69 = por %p67, %p68
    %s71 = sadd.s32 %s70, 1
    %p74 = scmp.eq.s32.totalorder %s15, 1
    %p75 = scmp.ne.s32.totalorder %s70, %s72
    %p76 = scmp.eq.s32.totalorder %s15, 0
    %p77 = por %p75, %p76
    %p78 = scmp.ne.s32.totalorder %s70, %s72
    %p79 = scmp.eq.s32.totalorder %s20, 1
    %p80 = por %p78, %p79
    %p81 = scmp.ne.s32.totalorder %s72, %s73
    %p82 = scmp.eq.s32.totalorder %s20, 0
    %p83 = por %p81, %p82
    %p84 = scmp.ne.s32.totalorder %s72, %s73
    %p85 = scmp.eq.s32.totalorder %s21, 1
    %p86 = por %p84, %p85
    %p88 = scmp.ne.s32.totalorder %s73, %s87
    %p89 = scmp.eq.s32.totalorder %s21, 0
    %p90 = por %p88, %p89
    %s92 = sadd.s32 %s91, 1
    %p95 = scmp.eq.s32.totalorder %s15, 1
    %p96 = scmp.ne.s32.totalorder %s91, %s93
    %p97 = scmp.eq.s32.totalorder %s15, 0
    %p98 = por %p96, %p97
    %p99 = scmp.ne.s32.totalorder %s91, %s93
    %p100 = scmp.eq.s32.totalorder %s20, 1
    %p101 = por %p99, %p100
    %p102 = scmp.ne.s32.totalorder %s93, %s94
    %p103 = scmp.eq.s32.totalorder %s20, 0
    %p104 = por %p102, %p103
    %p105 = scmp.ne.s32.totalorder %s93, %s94
    %p106 = scmp.eq.s32.totalorder %s21, 1
    %p107 = por %p105, %p106
    %p109 = scmp.ne.s32.totalorder %s94, %s108
    %p110 = scmp.eq.s32.totalorder %s21, 0
    %p111 = por %p109, %p110
    %s113 = sadd.s32 %s112, 1
    %p116 = scmp.eq.s32.totalorder %s15, 1
    %p117 = scmp.ne.s32.totalorder %s112, %s114
    %p118 = scmp.eq.s32.totalorder %s15, 0
    %p119 = por %p117, %p118
    %p120 = scmp.ne.s32.totalorder %s112, %s114
    %p121 = scmp.eq.s32.totalorder %s20, 1
    %p122 = por %p120, %p121
    %p123 = scmp.ne.s32.totalorder %s114, %s115
    %p124 = scmp.eq.s32.totalorder %s20, 0
    %p125 = por %p123, %p124
    %p126 = scmp.ne.s32.totalorder %s114, %s115
    %p127 = scmp.eq.s32.totalorder %s21, 1
    %p128 = por %p126, %p127
    %p130 = scmp.ne.s32.totalorder %s115, %s129
    %p131 = scmp.eq.s32.totalorder %s21, 0
    %p132 = por %p130, %p131
    %s134 = sadd.s32 %s133, 1
    %p137 = scmp.eq.s32.totalorder %s15, 1
    %p138 = scmp.ne.s32.totalorder %s133, %s135
    %p139 = scmp.eq.s32.totalorder %s15, 0
    %p140 = por %p138, %p139
    %p141 = scmp.ne.s32.totalorder %s133, %s135
    %p142 = scmp.eq.s32.totalorder %s20, 1
    %p143 = por %p141, %p142
    %p144 = scmp.ne.s32.totalorder %s135, %s136
    %p145 = scmp.eq.s32.totalorder %s20, 0
    %p146 = por %p144, %p145
    %p147 = scmp.ne.s32.totalorder %s135, %s136
    %p148 = scmp.eq.s32.totalorder %s21, 1
    %p149 = por %p147, %p148
    %p151 = scmp.ne.s32.totalorder %s136, %s150
    %p152 = scmp.eq.s32.totalorder %s21, 0
    %p153 = por %p151, %p152
    %s155 = sadd.s32 %s154, 1
    %p158 = scmp.eq.s32.totalorder %s15, 1
    %p159 = scmp.ne.s32.totalorder %s154, %s156
    %p160 = scmp.eq.s32.totalorder %s15, 0
    %p161 = por %p159, %p160
    %p162 = scmp.ne.s32.totalorder %s154, %s156
    %p163 = scmp.eq.s32.totalorder %s20, 1
    %p164 = por %p162, %p163
    %p165 = scmp.ne.s32.totalorder %s156, %s157
    %p166 = scmp.eq.s32.totalorder %s20, 0
    %p167 = por %p165, %p166
    %p168 = scmp.ne.s32.totalorder %s156, %s157
    %p169 = scmp.eq.s32.totalorder %s21, 1
    %p170 = por %p168, %p169
    %p172 = scmp.ne.s32.totalorder %s157, %s171
    %p173 = scmp.eq.s32.totalorder %s21, 0
    %p174 = por %p172, %p173
    %s176 = sadd.s32 %s175, 1
    %p179 = scmp.eq.s32.totalorder %s15, 1
    %p180 = scmp.ne.s32.totalorder %s175, %s177
    %p181 = scmp.eq.s32.totalorder %s15, 0
    %p182 = por %p180, %p181
    %p183 = scmp.ne.s32.totalorder %s175, %s177
    %p184 = scmp.eq.s32.totalorder %s20, 1
    %p185 = por %p183, %p184
    %p186 = scmp.ne.s32.totalorder %s177, %s178
    %p187 = scmp.eq.s32.totalorder %s20, 0
    %p188 = por %p186, %p187
    %p189 = scmp.ne.s32.totalorder %s177, %s178
    %p190 = scmp.eq.s32.totalorder %s21, 1
    %p191 = por %p189, %p190
    %p193 = scmp.ne.s32.totalorder %s178, %s192
    %p194 = scmp.eq.s32.totalorder %s21, 0
    %p195 = por %p193, %p194
    %s197 = sadd.s32 %s196, 1
    %p200 = scmp.eq.s32.totalorder %s15, 1
    %p201 = scmp.ne.s32.totalorder %s196, %s198
    %p202 = scmp.eq.s32.totalorder %s15, 0
    %p203 = por %p201, %p202
    %p204 = scmp.ne.s32.totalorder %s196, %s198
    %p205 = scmp.eq.s32.totalorder %s20, 1
    %p206 = por %p204, %p205
    %p207 = scmp.ne.s32.totalorder %s198, %s199
    %p208 = scmp.eq.s32.totalorder %s20, 0
    %p209 = por %p207, %p208
    %p210 = scmp.ne.s32.totalorder %s198, %s199
    %p211 = scmp.eq.s32.totalorder %s21, 1
    %p212 = por %p210, %p211
    %p214 = scmp.ne.s32.totalorder %s199, %s213
    %p215 = scmp.eq.s32.totalorder %s21, 0
    %p216 = por %p214, %p215
    %s217 = ssub.s32 %s15, %s22
    %p218 = scmp.eq.s32.totalorder %s217, 0
    %s220 = sadd.s32 %s219, 1
    %s221 = scalar_select %p218, %s219, %s220
    %p224 = pneg %p218
    %p225 = scmp.eq.s32.totalorder %s15, 1
    %p226 = por %p224, %p225
    %p227 = scmp.ne.s32.totalorder %s219, %s222
    %p228 = scmp.eq.s32.totalorder %s15, 0
    %p229 = por %p227, %p228
    %p230 = scmp.ne.s32.totalorder %s219, %s222
    %p231 = scmp.eq.s32.totalorder %s20, 1
    %p232 = por %p230, %p231
    %p233 = scmp.ne.s32.totalorder %s222, %s223
    %p234 = scmp.eq.s32.totalorder %s20, 0
    %p235 = por %p233, %p234
    %p236 = scmp.ne.s32.totalorder %s222, %s223
    %p237 = scmp.eq.s32.totalorder %s21, 1
    %p238 = por %p236, %p237
    %p240 = scmp.ne.s32.totalorder %s223, %s239
    %p241 = scmp.eq.s32.totalorder %s21, 0
    %p242 = por %p240, %p241
    %p243 = scmp.le.s32.totalorder 1, %s15
    %p244 = scmp.lt.s32.totalorder %s15, 3
    %p245 = pnand %p243, %p244
    %p246 = pneg %p245
    // Predicated region
    $region9: #{net_forward.1} parent=5 // pred_check
      _
    $region10: #{net_forward.1} parent=5 // pred_check_branch
      %248 = sbr.rel (%p245) target = $region12
    $region11: #{net_forward.1} parent=5 // pred_region
      %s249 = ssub.s32 %s15, 1
      // Predicated region
      $region13: #{net_forward.1} parent=11 // pred_check
        %p250 = pneg %p62
      $region14: #{net_forward.1} parent=11 // pred_check_branch
        %252 = sbr.rel (%p250) target = $region16
      $region15: #{net_forward.1} parent=11 // pred_region
        _
      $region16: #{net_forward.1} parent=11 // pred_fallthru
        _
      // Predicated region
      $region17: #{net_forward.1} parent=11 // pred_check
        %p253 = pneg %p83
      $region18: #{net_forward.1} parent=11 // pred_check_branch
        %255 = sbr.rel (%p253) target = $region20
      $region19: #{net_forward.1} parent=11 // pred_region
        _
      $region20: #{net_forward.1} parent=11 // pred_fallthru
        _
      // Predicated region
      $region21: #{net_forward.1} parent=11 // pred_check
        %p256 = pneg %p104
      $region22: #{net_forward.1} parent=11 // pred_check_branch
        %258 = sbr.rel (%p256) target = $region24
      $region23: #{net_forward.1} parent=11 // pred_region
        _
      $region24: #{net_forward.1} parent=11 // pred_fallthru
        _
      // Predicated region
      $region25: #{net_forward.1} parent=11 // pred_check
        %p259 = pneg %p125
      $region26: #{net_forward.1} parent=11 // pred_check_branch
        %261 = sbr.rel (%p259) target = $region28
      $region27: #{net_forward.1} parent=11 // pred_region
        _
      $region28: #{net_forward.1} parent=11 // pred_fallthru
        _
      // Predicated region
      $region29: #{net_forward.1} parent=11 // pred_check
        %p262 = pneg %p146
      $region30: #{net_forward.1} parent=11 // pred_check_branch
        %264 = sbr.rel (%p262) target = $region32
      $region31: #{net_forward.1} parent=11 // pred_region
        _
      $region32: #{net_forward.1} parent=11 // pred_fallthru
        _
      // Predicated region
      $region33: #{net_forward.1} parent=11 // pred_check
        %p265 = pneg %p167
      $region34: #{net_forward.1} parent=11 // pred_check_branch
        %267 = sbr.rel (%p265) target = $region36
      $region35: #{net_forward.1} parent=11 // pred_region
        _
      $region36: #{net_forward.1} parent=11 // pred_fallthru
        _
      // Predicated region
      $region37: #{net_forward.1} parent=11 // pred_check
        %p268 = pneg %p188
      $region38: #{net_forward.1} parent=11 // pred_check_branch
        %270 = sbr.rel (%p268) target = $region40
      $region39: #{net_forward.1} parent=11 // pred_region
        _
      $region40: #{net_forward.1} parent=11 // pred_fallthru
        _
      // Predicated region
      $region41: #{net_forward.1} parent=11 // pred_check
        %p271 = pneg %p209
      $region42: #{net_forward.1} parent=11 // pred_check_branch
        %273 = sbr.rel (%p271) target = $region44
      $region43: #{net_forward.1} parent=11 // pred_region
        _
      $region44: #{net_forward.1} parent=11 // pred_fallthru
        _
    $region12: #{net_forward.1} parent=5 // pred_fallthru
      _
    %p274 = scmp.lt.s32.totalorder %s15, 2
    // Predicated region
    $region45: #{net_forward.1} parent=5 // pred_check
      %p275 = pneg %p274
    $region46: #{net_forward.1} parent=5 // pred_check_branch
      %277 = sbr.rel (%p275) target = $region48
    $region47: #{net_forward.1} parent=5 // pred_region
      // Predicated region
      $region49: #{net_forward.1} parent=47 // pred_check
        %p278 = pneg %p35
      $region50: #{net_forward.1} parent=47 // pred_check_branch
        %280 = sbr.rel (%p278) target = $region52
      $region51: #{net_forward.1} parent=47 // pred_region
        %s281 = smul.u32 64, %s15
        %p282 = scmp.lt.s32.totalorder %s281, 127
        %s283 = scalar_select %p282, %s281, 127
        %s284 = smul.addr %s283, 8
        %s285 = scalar_lea.vmem %s0, %s284
        %s286 = smul.u32 64, %s15
      $region52: #{net_forward.1} parent=47 // pred_fallthru
        _
    $region48: #{net_forward.1} parent=5 // pred_fallthru
      _
    %p287 = scmp.le.s32.totalorder 1, %s15
    %p288 = scmp.lt.s32.totalorder %s15, 3
    %p289 = pnand %p287, %p288
    %p290 = pneg %p289
    // Predicated region
    $region53: #{net_forward.1} parent=5 // pred_check
      _
    $region54: #{net_forward.1} parent=5 // pred_check_branch
      %292 = sbr.rel (%p289) target = $region56
    $region55: #{net_forward.1} parent=5 // pred_region
      %s293 = ssub.s32 %s15, 1
      %s294 = smul.u32 64, %s20
      %p295 = scmp.lt.s32.totalorder %s294, 127
      %s296 = scalar_select %p295, %s294, 127
      %s297 = smul.addr %s296, 8
      %s298 = scalar_lea.vmem %s0, %s297
      %p299 = pneg %p41
      %p300 = pneg %p38
      %p301 = pneg %p62
      %p302 = pneg %p59
      %p303 = pneg %p83
      %p304 = pneg %p80
      %p305 = pneg %p104
      %p306 = pneg %p101
      %p307 = pneg %p125
      %p308 = pneg %p122
      %p309 = pneg %p146
      %p310 = pneg %p143
      %p311 = pneg %p167
      %p312 = pneg %p164
      %p313 = pneg %p188
      %p314 = pneg %p185
      %p315 = pneg %p209
      %p316 = pneg %p206
      %p317 = pneg %p235
      %p318 = pneg %p232
      %s319 = smul.u32 64, %s20
      %p320 = scmp.lt.s32.totalorder %s319, 127
      %s321 = scalar_select %p320, %s319, 127
      %s322 = smul.addr %s321, 8
      %s323 = scalar_lea.vmem %s9, %s322
      %s324 = smul.u32 64, %s20
      %p325 = scmp.lt.s32.totalorder %s324, 127
      %s326 = scalar_select %p325, %s324, 127
      %s327 = smul.addr %s326, 8
      %s328 = scalar_lea.vmem %s0, %s327
      %s329 = smul.u32 64, %s20
      %s330 = smul.u32 64, %s20
      %p331 = scmp.lt.s32.totalorder %s330, 127
      %s332 = scalar_select %p331, %s330, 127
      %s333 = smul.addr %s332, 8
      %s334 = scalar_lea.vmem %s9, %s333
      %s335 = smul.u32 64, %s20
      %v336 = vld [vmem:[%s328] sm:$0xff]
      %v337 = vld [vmem:[%s328 + $0x8] sm:$0xff]
      %v338 = vld [vmem:[%s328 + $0x10] sm:$0xff]
      %v339 = vld [vmem:[%s328 + $0x18] sm:$0xff]
      %v340 = vld [vmem:[%s328 + $0x20] sm:$0xff]
      %v341 = vld [vmem:[%s328 + $0x28] sm:$0xff]
      %v342 = vld [vmem:[%s328 + $0x30] sm:$0xff]
      %v343 = vld [vmem:[%s328 + $0x38] sm:$0xff]
      %v344 = vld [vmem:[%s328 + $0x40] sm:$0xff]
      %v345 = vld [vmem:[%s328 + $0x48] sm:$0xff]
      %v346 = vld [vmem:[%s328 + $0x50] sm:$0xff]
      %v347 = vld [vmem:[%s328 + $0x58] sm:$0xff]
      %v348 = vld [vmem:[%s328 + $0x60] sm:$0xff]
      %v349 = vld [vmem:[%s328 + $0x68] sm:$0xff]
      %v350 = vld [vmem:[%s328 + $0x70] sm:$0xff]
      %v351 = vld [vmem:[%s328 + $0x78] sm:$0xff]
      %v352 = vld [vmem:[%s328 + $0x80] sm:$0xff]
      %v353 = vld [vmem:[%s328 + $0x88] sm:$0xff]
      %v354 = vld [vmem:[%s328 + $0x90] sm:$0xff]
      %v355 = vld [vmem:[%s328 + $0x98] sm:$0xff]
      %v356 = vld [vmem:[%s328 + $0xa0] sm:$0xff]
      %v357 = vld [vmem:[%s328 + $0xa8] sm:$0xff]
      %v358 = vld [vmem:[%s328 + $0xb0] sm:$0xff]
      %v359 = vld [vmem:[%s328 + $0xb8] sm:$0xff]
      %v360 = vld [vmem:[%s328 + $0xc0] sm:$0xff]
      %v361 = vld [vmem:[%s328 + $0xc8] sm:$0xff]
      %v362 = vld [vmem:[%s328 + $0xd0] sm:$0xff]
      %v363 = vld [vmem:[%s328 + $0xd8] sm:$0xff]
      %v364 = vld [vmem:[%s328 + $0xe0] sm:$0xff]
      %v365 = vld [vmem:[%s328 + $0xe8] sm:$0xff]
      %v366 = vld [vmem:[%s328 + $0xf0] sm:$0xff]
      %v367 = vld [vmem:[%s328 + $0xf8] sm:$0xff]
      %v368 = vld [vmem:[%s328 + $0x100] sm:$0xff]
      %v369 = vld [vmem:[%s328 + $0x108] sm:$0xff]
      %v370 = vld [vmem:[%s328 + $0x110] sm:$0xff]
      %v371 = vld [vmem:[%s328 + $0x118] sm:$0xff]
      %v372 = vld [vmem:[%s328 + $0x120] sm:$0xff]
      %v373 = vld [vmem:[%s328 + $0x128] sm:$0xff]
      %v374 = vld [vmem:[%s328 + $0x130] sm:$0xff]
      %v375 = vld [vmem:[%s328 + $0x138] sm:$0xff]
      %v376 = vld [vmem:[%s328 + $0x140] sm:$0xff]
      %v377 = vld [vmem:[%s328 + $0x148] sm:$0xff]
      %v378 = vld [vmem:[%s328 + $0x150] sm:$0xff]
      %v379 = vld [vmem:[%s328 + $0x158] sm:$0xff]
      %v380 = vld [vmem:[%s328 + $0x160] sm:$0xff]
      %v381 = vld [vmem:[%s328 + $0x168] sm:$0xff]
      %v382 = vld [vmem:[%s328 + $0x170] sm:$0xff]
      %v383 = vld [vmem:[%s328 + $0x178] sm:$0xff]
      %v384 = vld [vmem:[%s328 + $0x180] sm:$0xff]
      %v385 = vld [vmem:[%s328 + $0x188] sm:$0xff]
      %v386 = vld [vmem:[%s328 + $0x190] sm:$0xff]
      %v387 = vld [vmem:[%s328 + $0x198] sm:$0xff]
      %v388 = vld [vmem:[%s328 + $0x1a0] sm:$0xff]
      %v389 = vld [vmem:[%s328 + $0x1a8] sm:$0xff]
      %v390 = vld [vmem:[%s328 + $0x1b0] sm:$0xff]
      %v391 = vld [vmem:[%s328 + $0x1b8] sm:$0xff]
      %v392 = vld [vmem:[%s328 + $0x1c0] sm:$0xff]
      %v393 = vld [vmem:[%s328 + $0x1c8] sm:$0xff]
      %v394 = vld [vmem:[%s328 + $0x1d0] sm:$0xff]
      %v395 = vld [vmem:[%s328 + $0x1d8] sm:$0xff]
      %v396 = vld [vmem:[%s328 + $0x1e0] sm:$0xff]
      %v397 = vld [vmem:[%s328 + $0x1e8] sm:$0xff]
      %v398 = vld [vmem:[%s328 + $0x1f0] sm:$0xff]
      %v399 = vld [vmem:[%s328 + $0x1f8] sm:$0xff]
      %v400 = vld [vmem:[%s1] sm:$0x3]
      %v401 = vld [vmem:[%s2] sm:$0x1]
      %v403 = vlaneseq
      %v404 = vshrl.u32 %v403, 7
      %v405 = vsub.s32 0, %v404
      %v406 = vrot.slane %v401, %v405
      %vm408 = vcmask 15360
      %v410 = vsel %vm408, %v336, 0
      %v413 = vsel %vm408, %v337, 0
      %v416 = vsel %vm408, %v338, 0
      %v419 = vsel %vm408, %v339, 0
      %v422 = vsel %vm408, %v340, 0
      %v425 = vsel %vm408, %v341, 0
      %v428 = vsel %vm408, %v342, 0
      %v431 = vsel %vm408, %v343, 0
      %v434 = vsel %vm408, %v344, 0
      %v437 = vsel %vm408, %v345, 0
      %v440 = vsel %vm408, %v346, 0
      %v443 = vsel %vm408, %v347, 0
      %v446 = vsel %vm408, %v348, 0
      %v449 = vsel %vm408, %v349, 0
      %v452 = vsel %vm408, %v350, 0
      %v455 = vsel %vm408, %v351, 0
      %v458 = vsel %vm408, %v352, 0
      %v461 = vsel %vm408, %v353, 0
      %v464 = vsel %vm408, %v354, 0
      %v467 = vsel %vm408, %v355, 0
      %v470 = vsel %vm408, %v356, 0
      %v473 = vsel %vm408, %v357, 0
      %v476 = vsel %vm408, %v358, 0
      %v479 = vsel %vm408, %v359, 0
      %v482 = vsel %vm408, %v360, 0
      %v485 = vsel %vm408, %v361, 0
      %v488 = vsel %vm408, %v362, 0
      %v491 = vsel %vm408, %v363, 0
      %v494 = vsel %vm408, %v364, 0
      %v497 = vsel %vm408, %v365, 0
      %v500 = vsel %vm408, %v366, 0
      %v503 = vsel %vm408, %v367, 0
      %v506 = vsel %vm408, %v368, 0
      %v509 = vsel %vm408, %v369, 0
      %v512 = vsel %vm408, %v370, 0
      %v515 = vsel %vm408, %v371, 0
      %v518 = vsel %vm408, %v372, 0
      %v521 = vsel %vm408, %v373, 0
      %v524 = vsel %vm408, %v374, 0
      %v527 = vsel %vm408, %v375, 0
      %v530 = vsel %vm408, %v376, 0
      %v533 = vsel %vm408, %v377, 0
      %v536 = vsel %vm408, %v378, 0
      %v539 = vsel %vm408, %v379, 0
      %v542 = vsel %vm408, %v380, 0
      %v545 = vsel %vm408, %v381, 0
      %v548 = vsel %vm408, %v382, 0
      %v551 = vsel %vm408, %v383, 0
      %v554 = vsel %vm408, %v384, 0
      %v557 = vsel %vm408, %v385, 0
      %v560 = vsel %vm408, %v386, 0
      %v563 = vsel %vm408, %v387, 0
      %v566 = vsel %vm408, %v388, 0
      %v569 = vsel %vm408, %v389, 0
      %v572 = vsel %vm408, %v390, 0
      %v575 = vsel %vm408, %v391, 0
      %v578 = vsel %vm408, %v392, 0
      %v581 = vsel %vm408, %v393, 0
      %v584 = vsel %vm408, %v394, 0
      %v587 = vsel %vm408, %v395, 0
      %v590 = vsel %vm408, %v396, 0
      %v593 = vsel %vm408, %v397, 0
      %v596 = vsel %vm408, %v398, 0
      %v599 = vsel %vm408, %v399, 0
      %vm601 = vcmask 1041408
      %v603 = vsel %vm601, %v400, 0
      %605 = vmatprep.subr.mxu0 0.0
      %606 = vmatpush1.msra.mxu0 %v603
      %607 = vmatprep.subr.mxu0 0.0
      %608 = vmatpush1.msra.mxu0 0.0
      %609 = vmatprep.subr.mxu0 0.0
      %610 = vmatpush1.msra.mxu0 0.0
      %611 = vmatprep.subr.mxu0 0.0
      %612 = vmatpush1.msra.mxu0 0.0
      %613 = vmatprep.subr.mxu0 0.0
      %614 = vmatpush1.msra.mxu0 0.0
      %615 = vmatprep.subr.mxu0 0.0
      %616 = vmatpush1.msra.mxu0 0.0
      %617 = vmatprep.subr.mxu0 0.0
      %618 = vmatpush1.msra.mxu0 0.0
      %619 = vmatprep.subr.mxu0 0.0
      %620 = vmatpush1.msra.mxu0 0.0
      %621 = vmatprep.subr.mxu0 0.0
      %622 = vmatpush1.msra.mxu0 0.0
      %623 = vmatprep.subr.mxu0 0.0
      %624 = vmatpush1.msra.mxu0 0.0
      %625 = vmatprep.subr.mxu0 0.0
      %626 = vmatpush1.msra.mxu0 0.0
      %627 = vmatprep.subr.mxu0 0.0
      %628 = vmatpush1.msra.mxu0 0.0
      %629 = vmatprep.subr.mxu0 0.0
      %630 = vmatpush1.msra.mxu0 0.0
      %631 = vmatprep.subr.mxu0 0.0
      %632 = vmatpush1.msra.mxu0 0.0
      %633 = vmatprep.subr.mxu0 0.0
      %634 = vmatpush1.msra.mxu0 0.0
      %635 = vmatprep.subr.mxu0 0.0
      %636 = vmatpush1.msra.mxu0 0.0
      %637 = vmatprep.subr.mxu0 0.0
      %638 = vmatpush1.msra.mxu0 0.0
      %639 = vmatprep.subr.mxu0 0.0
      %640 = vmatpush1.msra.mxu0 0.0
      %641 = vmatprep.subr.mxu0 0.0
      %642 = vmatpush1.msra.mxu0 0.0
      %643 = vmatprep.subr.mxu0 0.0
      %644 = vmatpush1.msra.mxu0 0.0
      %645 = vmatprep.subr.mxu0 0.0
      %646 = vmatpush1.msra.mxu0 0.0
      %647 = vmatprep.subr.mxu0 0.0
      %648 = vmatpush1.msra.mxu0 0.0
      %649 = vmatprep.subr.mxu0 0.0
      %650 = vmatpush1.msra.mxu0 0.0
      %651 = vmatprep.subr.mxu0 0.0
      %652 = vmatpush1.msra.mxu0 0.0
      %653 = vmatprep.subr.mxu0 0.0
      %654 = vmatpush1.msra.mxu0 0.0
      %655 = vmatprep.subr.mxu0 0.0
      %656 = vmatpush1.msra.mxu0 0.0
      %657 = vmatprep.subr.mxu0 0.0
      %658 = vmatpush1.msra.mxu0 0.0
      %659 = vmatprep.subr.mxu0 0.0
      %660 = vmatpush1.msra.mxu0 0.0
      %661 = vmatprep.subr.mxu0 0.0
      %662 = vmatpush1.msra.mxu0 0.0
      %663 = vmatprep.subr.mxu0 0.0
      %664 = vmatpush1.msra.mxu0 0.0
      %665 = vmatprep.subr.mxu0 0.0
      %666 = vmatpush1.msra.mxu0 0.0
      %667 = vmatprep.subr.mxu0 0.0
      %668 = vmatpush1.msra.mxu0 0.0
      %669 = vmatprep.mubr.f32.mxu0 0.0
      %670 = vmatmul.mubr.f32.gmra.mrb[0].mxu0 %v410
      %v671 = vpop.f32.mrb[0].mxu0
      %v672 = vadd.f32 %v406, %v671
      %v673 = vpop.f32.mrb[0].mxu0
      %674 = vmatprep.mubr.f32.mxu0 0.0
      %675 = vmatmul.mubr.f32.gmra.mrb[0].mxu0 %v413
      %v676 = vpop.f32.mrb[0].mxu0
      %v677 = vadd.f32 %v406, %v676
      %v678 = vpop.f32.mrb[0].mxu0
      %679 = vmatprep.mubr.f32.mxu0 0.0
      %680 = vmatmul.mubr.f32.gmra.mrb[0].mxu0 %v416
      %v681 = vpop.f32.mrb[0].mxu0
      %v682 = vadd.f32 %v406, %v681
      %v683 = vpop.f32.mrb[0].mxu0
      %684 = vmatprep.mubr.f32.mxu0 0.0
      %685 = vmatmul.mubr.f32.gmra.mrb[0].mxu0 %v419
      %v686 = vpop.f32.mrb[0].mxu0
      %v687 = vadd.f32 %v406, %v686
      %v688 = vpop.f32.mrb[0].mxu0
      %689 = vmatprep.mubr.f32.mxu0 0.0
      %690 = vmatmul.mubr.f32.gmra.mrb[0].mxu0 %v422
      %v691 = vpop.f32.mrb[0].mxu0
      %v692 = vadd.f32 %v406, %v691
      %v693 = vpop.f32.mrb[0].mxu0
      %694 = vmatprep.mubr.f32.mxu0 0.0
      %695 = vmatmul.mubr.f32.gmra.mrb[0].mxu0 %v425
      %v696 = vpop.f32.mrb[0].mxu0
      %v697 = vadd.f32 %v406, %v696
      %v698 = vpop.f32.mrb[0].mxu0
      %699 = vmatprep.mubr.f32.mxu0 0.0
      %700 = vmatmul.mubr.f32.gmra.mrb[0].mxu0 %v428
      %v701 = vpop.f32.mrb[0].mxu0
      %v702 = vadd.f32 %v406, %v701
      %v703 = vpop.f32.mrb[0].mxu0
      %704 = vmatprep.mubr.f32.mxu0 0.0
      %705 = vmatmul.mubr.f32.gmra.mrb[0].mxu0 %v431
      %v706 = vpop.f32.mrb[0].mxu0
      %v707 = vadd.f32 %v406, %v706
      %v708 = vpop.f32.mrb[0].mxu0
      %709 = vmatprep.mubr.f32.mxu0 0.0
      %710 = vmatmul.mubr.f32.gmra.mrb[0].mxu0 %v434
      %v711 = vpop.f32.mrb[0].mxu0
      %v712 = vadd.f32 %v406, %v711
      %v713 = vpop.f32.mrb[0].mxu0
      %714 = vmatprep.mubr.f32.mxu0 0.0
      %715 = vmatmul.mubr.f32.gmra.mrb[0].mxu0 %v437
      %v716 = vpop.f32.mrb[0].mxu0
      %v717 = vadd.f32 %v406, %v716
      %v718 = vpop.f32.mrb[0].mxu0
      %719 = vmatprep.mubr.f32.mxu0 0.0
      %720 = vmatmul.mubr.f32.gmra.mrb[0].mxu0 %v440
      %v721 = vpop.f32.mrb[0].mxu0
      %v722 = vadd.f32 %v406, %v721
      %v723 = vpop.f32.mrb[0].mxu0
      %724 = vmatprep.mubr.f32.mxu0 0.0
      %725 = vmatmul.mubr.f32.gmra.mrb[0].mxu0 %v443
      %v726 = vpop.f32.mrb[0].mxu0
      %v727 = vadd.f32 %v406, %v726
      %v728 = vpop.f32.mrb[0].mxu0
      %729 = vmatprep.mubr.f32.mxu0 0.0
      %730 = vmatmul.mubr.f32.gmra.mrb[0].mxu0 %v446
      %v731 = vpop.f32.mrb[0].mxu0
      %v732 = vadd.f32 %v406, %v731
      %v733 = vpop.f32.mrb[0].mxu0
      %734 = vmatprep.mubr.f32.mxu0 0.0
      %735 = vmatmul.mubr.f32.gmra.mrb[0].mxu0 %v449
      %v736 = vpop.f32.mrb[0].mxu0
      %v737 = vadd.f32 %v406, %v736
      %v738 = vpop.f32.mrb[0].mxu0
      %739 = vmatprep.mubr.f32.mxu0 0.0
      %740 = vmatmul.mubr.f32.gmra.mrb[0].mxu0 %v452
      %v741 = vpop.f32.mrb[0].mxu0
      %v742 = vadd.f32 %v406, %v741
      %v743 = vpop.f32.mrb[0].mxu0
      %744 = vmatprep.mubr.f32.mxu0 0.0
      %745 = vmatmul.mubr.f32.gmra.mrb[0].mxu0 %v455
      %v746 = vpop.f32.mrb[0].mxu0
      %v747 = vadd.f32 %v406, %v746
      %v748 = vpop.f32.mrb[0].mxu0
      %749 = vmatprep.mubr.f32.mxu0 0.0
      %750 = vmatmul.mubr.f32.gmra.mrb[0].mxu0 %v458
      %v751 = vpop.f32.mrb[0].mxu0
      %v752 = vadd.f32 %v406, %v751
      %v753 = vpop.f32.mrb[0].mxu0
      %754 = vmatprep.mubr.f32.mxu0 0.0
      %755 = vmatmul.mubr.f32.gmra.mrb[0].mxu0 %v461
      %v756 = vpop.f32.mrb[0].mxu0
      %v757 = vadd.f32 %v406, %v756
      %v758 = vpop.f32.mrb[0].mxu0
      %759 = vmatprep.mubr.f32.mxu0 0.0
      %760 = vmatmul.mubr.f32.gmra.mrb[0].mxu0 %v464
      %v761 = vpop.f32.mrb[0].mxu0
      %v762 = vadd.f32 %v406, %v761
      %v763 = vpop.f32.mrb[0].mxu0
      %764 = vmatprep.mubr.f32.mxu0 0.0
      %765 = vmatmul.mubr.f32.gmra.mrb[0].mxu0 %v467
      %v766 = vpop.f32.mrb[0].mxu0
      %v767 = vadd.f32 %v406, %v766
      %v768 = vpop.f32.mrb[0].mxu0
      %769 = vmatprep.mubr.f32.mxu0 0.0
      %770 = vmatmul.mubr.f32.gmra.mrb[0].mxu0 %v470
      %v771 = vpop.f32.mrb[0].mxu0
      %v772 = vadd.f32 %v406, %v771
      %v773 = vpop.f32.mrb[0].mxu0
      %774 = vmatprep.mubr.f32.mxu0 0.0
      %775 = vmatmul.mubr.f32.gmra.mrb[0].mxu0 %v473
      %v776 = vpop.f32.mrb[0].mxu0
      %v777 = vadd.f32 %v406, %v776
      %v778 = vpop.f32.mrb[0].mxu0
      %779 = vmatprep.mubr.f32.mxu0 0.0
      %780 = vmatmul.mubr.f32.gmra.mrb[0].mxu0 %v476
      %v781 = vpop.f32.mrb[0].mxu0
      %v782 = vadd.f32 %v406, %v781
      %v783 = vpop.f32.mrb[0].mxu0
      %784 = vmatprep.mubr.f32.mxu0 0.0
      %785 = vmatmul.mubr.f32.gmra.mrb[0].mxu0 %v479
      %v786 = vpop.f32.mrb[0].mxu0
      %v787 = vadd.f32 %v406, %v786
      %v788 = vpop.f32.mrb[0].mxu0
      %789 = vmatprep.mubr.f32.mxu0 0.0
      %790 = vmatmul.mubr.f32.gmra.mrb[0].mxu0 %v482
      %v791 = vpop.f32.mrb[0].mxu0
      %v792 = vadd.f32 %v406, %v791
      %v793 = vpop.f32.mrb[0].mxu0
      %794 = vmatprep.mubr.f32.mxu0 0.0
      %795 = vmatmul.mubr.f32.gmra.mrb[0].mxu0 %v485
      %v796 = vpop.f32.mrb[0].mxu0
      %v797 = vadd.f32 %v406, %v796
      %v798 = vpop.f32.mrb[0].mxu0
      %799 = vmatprep.mubr.f32.mxu0 0.0
      %800 = vmatmul.mubr.f32.gmra.mrb[0].mxu0 %v488
      %v801 = vpop.f32.mrb[0].mxu0
      %v802 = vadd.f32 %v406, %v801
      %v803 = vpop.f32.mrb[0].mxu0
      %804 = vmatprep.mubr.f32.mxu0 0.0
      %805 = vmatmul.mubr.f32.gmra.mrb[0].mxu0 %v491
      %v806 = vpop.f32.mrb[0].mxu0
      %v807 = vadd.f32 %v406, %v806
      %v808 = vpop.f32.mrb[0].mxu0
      %809 = vmatprep.mubr.f32.mxu0 0.0
      %810 = vmatmul.mubr.f32.gmra.mrb[0].mxu0 %v494
      %v811 = vpop.f32.mrb[0].mxu0
      %v812 = vadd.f32 %v406, %v811
      %v813 = vpop.f32.mrb[0].mxu0
      %814 = vmatprep.mubr.f32.mxu0 0.0
      %815 = vmatmul.mubr.f32.gmra.mrb[0].mxu0 %v497
      %v816 = vpop.f32.mrb[0].mxu0
      %v817 = vadd.f32 %v406, %v816
      %v818 = vpop.f32.mrb[0].mxu0
      %819 = vmatprep.mubr.f32.mxu0 0.0
      %820 = vmatmul.mubr.f32.gmra.mrb[0].mxu0 %v500
      %v821 = vpop.f32.mrb[0].mxu0
      %v822 = vadd.f32 %v406, %v821
      %v823 = vpop.f32.mrb[0].mxu0
      %824 = vmatprep.mubr.f32.mxu0 0.0
      %825 = vmatmul.mubr.f32.gmra.mrb[0].mxu0 %v503
      %v826 = vpop.f32.mrb[0].mxu0
      %v827 = vadd.f32 %v406, %v826
      %v828 = vpop.f32.mrb[0].mxu0
      %829 = vmatprep.mubr.f32.mxu0 0.0
      %830 = vmatmul.mubr.f32.gmra.mrb[0].mxu0 %v506
      %v831 = vpop.f32.mrb[0].mxu0
      %v832 = vadd.f32 %v406, %v831
      %v833 = vpop.f32.mrb[0].mxu0
      %834 = vmatprep.mubr.f32.mxu0 0.0
      %835 = vmatmul.mubr.f32.gmra.mrb[0].mxu0 %v509
      %v836 = vpop.f32.mrb[0].mxu0
      %v837 = vadd.f32 %v406, %v836
      %v838 = vpop.f32.mrb[0].mxu0
      %839 = vmatprep.mubr.f32.mxu0 0.0
      %840 = vmatmul.mubr.f32.gmra.mrb[0].mxu0 %v512
      %v841 = vpop.f32.mrb[0].mxu0
      %v842 = vadd.f32 %v406, %v841
      %v843 = vpop.f32.mrb[0].mxu0
      %844 = vmatprep.mubr.f32.mxu0 0.0
      %845 = vmatmul.mubr.f32.gmra.mrb[0].mxu0 %v515
      %v846 = vpop.f32.mrb[0].mxu0
      %v847 = vadd.f32 %v406, %v846
      %v848 = vpop.f32.mrb[0].mxu0
      %849 = vmatprep.mubr.f32.mxu0 0.0
      %850 = vmatmul.mubr.f32.gmra.mrb[0].mxu0 %v518
      %v851 = vpop.f32.mrb[0].mxu0
      %v852 = vadd.f32 %v406, %v851
      %v853 = vpop.f32.mrb[0].mxu0
      %854 = vmatprep.mubr.f32.mxu0 0.0
      %855 = vmatmul.mubr.f32.gmra.mrb[0].mxu0 %v521
      %v856 = vpop.f32.mrb[0].mxu0
      %v857 = vadd.f32 %v406, %v856
      %v858 = vpop.f32.mrb[0].mxu0
      %859 = vmatprep.mubr.f32.mxu0 0.0
      %860 = vmatmul.mubr.f32.gmra.mrb[0].mxu0 %v524
      %v861 = vpop.f32.mrb[0].mxu0
      %v862 = vadd.f32 %v406, %v861
      %v863 = vpop.f32.mrb[0].mxu0
      %864 = vmatprep.mubr.f32.mxu0 0.0
      %865 = vmatmul.mubr.f32.gmra.mrb[0].mxu0 %v527
      %v866 = vpop.f32.mrb[0].mxu0
      %v867 = vadd.f32 %v406, %v866
      %v868 = vpop.f32.mrb[0].mxu0
      %869 = vmatprep.mubr.f32.mxu0 0.0
      %870 = vmatmul.mubr.f32.gmra.mrb[0].mxu0 %v530
      %v871 = vpop.f32.mrb[0].mxu0
      %v872 = vadd.f32 %v406, %v871
      %v873 = vpop.f32.mrb[0].mxu0
      %874 = vmatprep.mubr.f32.mxu0 0.0
      %875 = vmatmul.mubr.f32.gmra.mrb[0].mxu0 %v533
      %v876 = vpop.f32.mrb[0].mxu0
      %v877 = vadd.f32 %v406, %v876
      %v878 = vpop.f32.mrb[0].mxu0
      %879 = vmatprep.mubr.f32.mxu0 0.0
      %880 = vmatmul.mubr.f32.gmra.mrb[0].mxu0 %v536
      %v881 = vpop.f32.mrb[0].mxu0
      %v882 = vadd.f32 %v406, %v881
      %v883 = vpop.f32.mrb[0].mxu0
      %884 = vmatprep.mubr.f32.mxu0 0.0
      %885 = vmatmul.mubr.f32.gmra.mrb[0].mxu0 %v539
      %v886 = vpop.f32.mrb[0].mxu0
      %v887 = vadd.f32 %v406, %v886
      %v888 = vpop.f32.mrb[0].mxu0
      %889 = vmatprep.mubr.f32.mxu0 0.0
      %890 = vmatmul.mubr.f32.gmra.mrb[0].mxu0 %v542
      %v891 = vpop.f32.mrb[0].mxu0
      %v892 = vadd.f32 %v406, %v891
      %v893 = vpop.f32.mrb[0].mxu0
      %894 = vmatprep.mubr.f32.mxu0 0.0
      %895 = vmatmul.mubr.f32.gmra.mrb[0].mxu0 %v545
      %v896 = vpop.f32.mrb[0].mxu0
      %v897 = vadd.f32 %v406, %v896
      %v898 = vpop.f32.mrb[0].mxu0
      %899 = vmatprep.mubr.f32.mxu0 0.0
      %900 = vmatmul.mubr.f32.gmra.mrb[0].mxu0 %v548
      %v901 = vpop.f32.mrb[0].mxu0
      %v902 = vadd.f32 %v406, %v901
      %v903 = vpop.f32.mrb[0].mxu0
      %904 = vmatprep.mubr.f32.mxu0 0.0
      %905 = vmatmul.mubr.f32.gmra.mrb[0].mxu0 %v551
      %v906 = vpop.f32.mrb[0].mxu0
      %v907 = vadd.f32 %v406, %v906
      %v908 = vpop.f32.mrb[0].mxu0
      %909 = vmatprep.mubr.f32.mxu0 0.0
      %910 = vmatmul.mubr.f32.gmra.mrb[0].mxu0 %v554
      %v911 = vpop.f32.mrb[0].mxu0
      %v912 = vadd.f32 %v406, %v911
      %v913 = vpop.f32.mrb[0].mxu0
      %914 = vmatprep.mubr.f32.mxu0 0.0
      %915 = vmatmul.mubr.f32.gmra.mrb[0].mxu0 %v557
      %v916 = vpop.f32.mrb[0].mxu0
      %v917 = vadd.f32 %v406, %v916
      %v918 = vpop.f32.mrb[0].mxu0
      %919 = vmatprep.mubr.f32.mxu0 0.0
      %920 = vmatmul.mubr.f32.gmra.mrb[0].mxu0 %v560
      %v921 = vpop.f32.mrb[0].mxu0
      %v922 = vadd.f32 %v406, %v921
      %v923 = vpop.f32.mrb[0].mxu0
      %924 = vmatprep.mubr.f32.mxu0 0.0
      %925 = vmatmul.mubr.f32.gmra.mrb[0].mxu0 %v563
      %v926 = vpop.f32.mrb[0].mxu0
      %v927 = vadd.f32 %v406, %v926
      %v928 = vpop.f32.mrb[0].mxu0
      %929 = vmatprep.mubr.f32.mxu0 0.0
      %930 = vmatmul.mubr.f32.gmra.mrb[0].mxu0 %v566
      %v931 = vpop.f32.mrb[0].mxu0
      %v932 = vadd.f32 %v406, %v931
      %v933 = vpop.f32.mrb[0].mxu0
      %934 = vmatprep.mubr.f32.mxu0 0.0
      %935 = vmatmul.mubr.f32.gmra.mrb[0].mxu0 %v569
      %v936 = vpop.f32.mrb[0].mxu0
      %v937 = vadd.f32 %v406, %v936
      %v938 = vpop.f32.mrb[0].mxu0
      %939 = vmatprep.mubr.f32.mxu0 0.0
      %940 = vmatmul.mubr.f32.gmra.mrb[0].mxu0 %v572
      %v941 = vpop.f32.mrb[0].mxu0
      %v942 = vadd.f32 %v406, %v941
      %v943 = vpop.f32.mrb[0].mxu0
      %944 = vmatprep.mubr.f32.mxu0 0.0
      %945 = vmatmul.mubr.f32.gmra.mrb[0].mxu0 %v575
      %v946 = vpop.f32.mrb[0].mxu0
      %v947 = vadd.f32 %v406, %v946
      %v948 = vpop.f32.mrb[0].mxu0
      %949 = vmatprep.mubr.f32.mxu0 0.0
      %950 = vmatmul.mubr.f32.gmra.mrb[0].mxu0 %v578
      %v951 = vpop.f32.mrb[0].mxu0
      %v952 = vadd.f32 %v406, %v951
      %v953 = vpop.f32.mrb[0].mxu0
      %954 = vmatprep.mubr.f32.mxu0 0.0
      %955 = vmatmul.mubr.f32.gmra.mrb[0].mxu0 %v581
      %v956 = vpop.f32.mrb[0].mxu0
      %v957 = vadd.f32 %v406, %v956
      %v958 = vpop.f32.mrb[0].mxu0
      %959 = vmatprep.mubr.f32.mxu0 0.0
      %960 = vmatmul.mubr.f32.gmra.mrb[0].mxu0 %v584
      %v961 = vpop.f32.mrb[0].mxu0
      %v962 = vadd.f32 %v406, %v961
      %v963 = vpop.f32.mrb[0].mxu0
      %964 = vmatprep.mubr.f32.mxu0 0.0
      %965 = vmatmul.mubr.f32.gmra.mrb[0].mxu0 %v587
      %v966 = vpop.f32.mrb[0].mxu0
      %v967 = vadd.f32 %v406, %v966
      %v968 = vpop.f32.mrb[0].mxu0
      %969 = vmatprep.mubr.f32.mxu0 0.0
      %970 = vmatmul.mubr.f32.gmra.mrb[0].mxu0 %v590
      %v971 = vpop.f32.mrb[0].mxu0
      %v972 = vadd.f32 %v406, %v971
      %v973 = vpop.f32.mrb[0].mxu0
      %974 = vmatprep.mubr.f32.mxu0 0.0
      %975 = vmatmul.mubr.f32.gmra.mrb[0].mxu0 %v593
      %v976 = vpop.f32.mrb[0].mxu0
      %v977 = vadd.f32 %v406, %v976
      %v978 = vpop.f32.mrb[0].mxu0
      %979 = vmatprep.mubr.f32.mxu0 0.0
      %980 = vmatmul.mubr.f32.gmra.mrb[0].mxu0 %v596
      %v981 = vpop.f32.mrb[0].mxu0
      %v982 = vadd.f32 %v406, %v981
      %v983 = vpop.f32.mrb[0].mxu0
      %984 = vmatprep.mubr.f32.mxu0 0.0
      %985 = vmatmul.mubr.f32.gmra.mrb[0].mxu0 %v599
      %v986 = vpop.f32.mrb[0].mxu0
      %v987 = vadd.f32 %v406, %v986
      %v988 = vpop.f32.mrb[0].mxu0
      %989 = vdwg.mxu0
      %v990 = vtanh.pop %v672
      %v991 = vtanh.pop %v677
      %v992 = vtanh.pop %v682
      %v993 = vtanh.pop %v687
      %v994 = vtanh.pop %v692
      %v995 = vtanh.pop %v697
      %v996 = vtanh.pop %v702
      %v997 = vtanh.pop %v707
      %v998 = vtanh.pop %v712
      %v999 = vtanh.pop %v717
      %v1000 = vtanh.pop %v722
      %v1001 = vtanh.pop %v727
      %v1002 = vtanh.pop %v732
      %v1003 = vtanh.pop %v737
      %v1004 = vtanh.pop %v742
      %v1005 = vtanh.pop %v747
      %v1006 = vtanh.pop %v752
      %v1007 = vtanh.pop %v757
      %v1008 = vtanh.pop %v762
      %v1009 = vtanh.pop %v767
      %v1010 = vtanh.pop %v772
      %v1011 = vtanh.pop %v777
      %v1012 = vtanh.pop %v782
      %v1013 = vtanh.pop %v787
      %v1014 = vtanh.pop %v792
      %v1015 = vtanh.pop %v797
      %v1016 = vtanh.pop %v802
      %v1017 = vtanh.pop %v807
      %v1018 = vtanh.pop %v812
      %v1019 = vtanh.pop %v817
      %v1020 = vtanh.pop %v822
      %v1021 = vtanh.pop %v827
      %v1022 = vtanh.pop %v832
      %v1023 = vtanh.pop %v837
      %v1024 = vtanh.pop %v842
      %v1025 = vtanh.pop %v847
      %v1026 = vtanh.pop %v852
      %v1027 = vtanh.pop %v857
      %v1028 = vtanh.pop %v862
      %v1029 = vtanh.pop %v867
      %v1030 = vtanh.pop %v872
      %v1031 = vtanh.pop %v877
      %v1032 = vtanh.pop %v882
      %v1033 = vtanh.pop %v887
      %v1034 = vtanh.pop %v892
      %v1035 = vtanh.pop %v897
      %v1036 = vtanh.pop %v902
      %v1037 = vtanh.pop %v907
      %v1038 = vtanh.pop %v912
      %v1039 = vtanh.pop %v917
      %v1040 = vtanh.pop %v922
      %v1041 = vtanh.pop %v927
      %v1042 = vtanh.pop %v932
      %v1043 = vtanh.pop %v937
      %v1044 = vtanh.pop %v942
      %v1045 = vtanh.pop %v947
      %v1046 = vtanh.pop %v952
      %v1047 = vtanh.pop %v957
      %v1048 = vtanh.pop %v962
      %v1049 = vtanh.pop %v967
      %v1050 = vtanh.pop %v972
      %v1051 = vtanh.pop %v977
      %v1052 = vtanh.pop %v982
      %v1053 = vtanh.pop %v987
      %v1054 = vld [vmem:[%s3] sm:$0xff]
      %v1055 = vld [vmem:[%s3 + $0x8] sm:$0xff]
      %v1056 = vld [vmem:[%s3 + $0x10] sm:$0xff]
      %v1057 = vld [vmem:[%s3 + $0x18] sm:$0xff]
      %v1058 = vld [vmem:[%s4] sm:$0x1]
      %v1060 = vlaneseq
      %v1061 = vshrl.u32 %v1060, 7
      %v1062 = vsub.s32 0, %v1061
      %v1063 = vrot.slane %v1058, %v1062
      %vm1065 = vcmask 261120
      %v1067 = vsel %vm1065, %v990, 0
      %v1070 = vsel %vm1065, %v991, 0
      %v1073 = vsel %vm1065, %v992, 0
      %v1076 = vsel %vm1065, %v993, 0
      %v1079 = vsel %vm1065, %v994, 0
      %v1082 = vsel %vm1065, %v995, 0
      %v1085 = vsel %vm1065, %v996, 0
      %v1088 = vsel %vm1065, %v997, 0
      %v1091 = vsel %vm1065, %v998, 0
      %v1094 = vsel %vm1065, %v999, 0
      %v1097 = vsel %vm1065, %v1000, 0
      %v1100 = vsel %vm1065, %v1001, 0
      %v1103 = vsel %vm1065, %v1002, 0
      %v1106 = vsel %vm1065, %v1003, 0
      %v1109 = vsel %vm1065, %v1004, 0
      %v1112 = vsel %vm1065, %v1005, 0
      %v1115 = vsel %vm1065, %v1006, 0
      %v1118 = vsel %vm1065, %v1007, 0
      %v1121 = vsel %vm1065, %v1008, 0
      %v1124 = vsel %vm1065, %v1009, 0
      %v1127 = vsel %vm1065, %v1010, 0
      %v1130 = vsel %vm1065, %v1011, 0
      %v1133 = vsel %vm1065, %v1012, 0
      %v1136 = vsel %vm1065, %v1013, 0
      %v1139 = vsel %vm1065, %v1014, 0
      %v1142 = vsel %vm1065, %v1015, 0
      %v1145 = vsel %vm1065, %v1016, 0
      %v1148 = vsel %vm1065, %v1017, 0
      %v1151 = vsel %vm1065, %v1018, 0
      %v1154 = vsel %vm1065, %v1019, 0
      %v1157 = vsel %vm1065, %v1020, 0
      %v1160 = vsel %vm1065, %v1021, 0
      %v1163 = vsel %vm1065, %v1022, 0
      %v1166 = vsel %vm1065, %v1023, 0
      %v1169 = vsel %vm1065, %v1024, 0
      %v1172 = vsel %vm1065, %v1025, 0
      %v1175 = vsel %vm1065, %v1026, 0
      %v1178 = vsel %vm1065, %v1027, 0
      %v1181 = vsel %vm1065, %v1028, 0
      %v1184 = vsel %vm1065, %v1029, 0
      %v1187 = vsel %vm1065, %v1030, 0
      %v1190 = vsel %vm1065, %v1031, 0
      %v1193 = vsel %vm1065, %v1032, 0
      %v1196 = vsel %vm1065, %v1033, 0
      %v1199 = vsel %vm1065, %v1034, 0
      %v1202 = vsel %vm1065, %v1035, 0
      %v1205 = vsel %vm1065, %v1036, 0
      %v1208 = vsel %vm1065, %v1037, 0
      %v1211 = vsel %vm1065, %v1038, 0
      %v1214 = vsel %vm1065, %v1039, 0
      %v1217 = vsel %vm1065, %v1040, 0
      %v1220 = vsel %vm1065, %v1041, 0
      %v1223 = vsel %vm1065, %v1042, 0
      %v1226 = vsel %vm1065, %v1043, 0
      %v1229 = vsel %vm1065, %v1044, 0
      %v1232 = vsel %vm1065, %v1045, 0
      %v1235 = vsel %vm1065, %v1046, 0
      %v1238 = vsel %vm1065, %v1047, 0
      %v1241 = vsel %vm1065, %v1048, 0
      %v1244 = vsel %vm1065, %v1049, 0
      %v1247 = vsel %vm1065, %v1050, 0
      %v1250 = vsel %vm1065, %v1051, 0
      %v1253 = vsel %vm1065, %v1052, 0
      %v1256 = vsel %vm1065, %v1053, 0
      %1258 = vmatprep.subr.mxu0 0.0
      %1259 = vmatpush1.msra.mxu0 %v1054
      %1260 = vmatprep.subr.mxu0 0.0
      %1261 = vmatpush1.msra.mxu0 %v1055
      %1262 = vmatprep.subr.mxu0 0.0
      %1263 = vmatpush1.msra.mxu0 %v1056
      %1264 = vmatprep.subr.mxu0 0.0
      %1265 = vmatpush1.msra.mxu0 %v1057
      %1266 = vmatprep.subr.mxu0 0.0
      %1267 = vmatpush1.msra.mxu0 0.0
      %1268 = vmatprep.subr.mxu0 0.0
      %1269 = vmatpush1.msra.mxu0 0.0
      %1270 = vmatprep.subr.mxu0 0.0
      %1271 = vmatpush1.msra.mxu0 0.0
      %1272 = vmatprep.subr.mxu0 0.0
      %1273 = vmatpush1.msra.mxu0 0.0
      %1274 = vmatprep.subr.mxu0 0.0
      %1275 = vmatpush1.msra.mxu0 0.0
      %1276 = vmatprep.subr.mxu0 0.0
      %1277 = vmatpush1.msra.mxu0 0.0
      %1278 = vmatprep.subr.mxu0 0.0
      %1279 = vmatpush1.msra.mxu0 0.0
      %1280 = vmatprep.subr.mxu0 0.0
      %1281 = vmatpush1.msra.mxu0 0.0
      %1282 = vmatprep.subr.mxu0 0.0
      %1283 = vmatpush1.msra.mxu0 0.0
      %1284 = vmatprep.subr.mxu0 0.0
      %1285 = vmatpush1.msra.mxu0 0.0
      %1286 = vmatprep.subr.mxu0 0.0
      %1287 = vmatpush1.msra.mxu0 0.0
      %1288 = vmatprep.subr.mxu0 0.0
      %1289 = vmatpush1.msra.mxu0 0.0
      %1290 = vmatprep.subr.mxu0 0.0
      %1291 = vmatpush1.msra.mxu0 0.0
      %1292 = vmatprep.subr.mxu0 0.0
      %1293 = vmatpush1.msra.mxu0 0.0
      %1294 = vmatprep.subr.mxu0 0.0
      %1295 = vmatpush1.msra.mxu0 0.0
      %1296 = vmatprep.subr.mxu0 0.0
      %1297 = vmatpush1.msra.mxu0 0.0
      %1298 = vmatprep.subr.mxu0 0.0
      %1299 = vmatpush1.msra.mxu0 0.0
      %1300 = vmatprep.subr.mxu0 0.0
      %1301 = vmatpush1.msra.mxu0 0.0
      %1302 = vmatprep.subr.mxu0 0.0
      %1303 = vmatpush1.msra.mxu0 0.0
      %1304 = vmatprep.subr.mxu0 0.0
      %1305 = vmatpush1.msra.mxu0 0.0
      %1306 = vmatprep.subr.mxu0 0.0
      %1307 = vmatpush1.msra.mxu0 0.0
      %1308 = vmatprep.subr.mxu0 0.0
      %1309 = vmatpush1.msra.mxu0 0.0
      %1310 = vmatprep.subr.mxu0 0.0
      %1311 = vmatpush1.msra.mxu0 0.0
      %1312 = vmatprep.subr.mxu0 0.0
      %1313 = vmatpush1.msra.mxu0 0.0
      %1314 = vmatprep.subr.mxu0 0.0
      %1315 = vmatpush1.msra.mxu0 0.0
      %1316 = vmatprep.subr.mxu0 0.0
      %1317 = vmatpush1.msra.mxu0 0.0
      %1318 = vmatprep.subr.mxu0 0.0
      %1319 = vmatpush1.msra.mxu0 0.0
      %1320 = vmatprep.subr.mxu0 0.0
      %1321 = vmatpush1.msra.mxu0 0.0
      %1322 = vmatprep.mubr.f32.mxu0 0.0
      %1323 = vmatmul.mubr.f32.gmra.mrb[0].mxu0 %v1067
      %v1324 = vpop.f32.mrb[0].mxu0
      %v1325 = vadd.f32 %v1063, %v1324
      %v1326 = vpop.f32.mrb[0].mxu0
      %1327 = vmatprep.mubr.f32.mxu0 0.0
      %1328 = vmatmul.mubr.f32.gmra.mrb[0].mxu0 %v1070
      %v1329 = vpop.f32.mrb[0].mxu0
      %v1330 = vadd.f32 %v1063, %v1329
      %v1331 = vpop.f32.mrb[0].mxu0
      %1332 = vmatprep.mubr.f32.mxu0 0.0
      %1333 = vmatmul.mubr.f32.gmra.mrb[0].mxu0 %v1073
      %v1334 = vpop.f32.mrb[0].mxu0
      %v1335 = vadd.f32 %v1063, %v1334
      %v1336 = vpop.f32.mrb[0].mxu0
      %1337 = vmatprep.mubr.f32.mxu0 0.0
      %1338 = vmatmul.mubr.f32.gmra.mrb[0].mxu0 %v1076
      %v1339 = vpop.f32.mrb[0].mxu0
      %v1340 = vadd.f32 %v1063, %v1339
      %v1341 = vpop.f32.mrb[0].mxu0
      %1342 = vmatprep.mubr.f32.mxu0 0.0
      %1343 = vmatmul.mubr.f32.gmra.mrb[0].mxu0 %v1079
      %v1344 = vpop.f32.mrb[0].mxu0
      %v1345 = vadd.f32 %v1063, %v1344
      %v1346 = vpop.f32.mrb[0].mxu0
      %1347 = vmatprep.mubr.f32.mxu0 0.0
      %1348 = vmatmul.mubr.f32.gmra.mrb[0].mxu0 %v1082
      %v1349 = vpop.f32.mrb[0].mxu0
      %v1350 = vadd.f32 %v1063, %v1349
      %v1351 = vpop.f32.mrb[0].mxu0
      %1352 = vmatprep.mubr.f32.mxu0 0.0
      %1353 = vmatmul.mubr.f32.gmra.mrb[0].mxu0 %v1085
      %v1354 = vpop.f32.mrb[0].mxu0
      %v1355 = vadd.f32 %v1063, %v1354
      %v1356 = vpop.f32.mrb[0].mxu0
      %1357 = vmatprep.mubr.f32.mxu0 0.0
      %1358 = vmatmul.mubr.f32.gmra.mrb[0].mxu0 %v1088
      %v1359 = vpop.f32.mrb[0].mxu0
      %v1360 = vadd.f32 %v1063, %v1359
      %v1361 = vpop.f32.mrb[0].mxu0
      %1362 = vmatprep.mubr.f32.mxu0 0.0
      %1363 = vmatmul.mubr.f32.gmra.mrb[0].mxu0 %v1091
      %v1364 = vpop.f32.mrb[0].mxu0
      %v1365 = vadd.f32 %v1063, %v1364
      %v1366 = vpop.f32.mrb[0].mxu0
      %1367 = vmatprep.mubr.f32.mxu0 0.0
      %1368 = vmatmul.mubr.f32.gmra.mrb[0].mxu0 %v1094
      %v1369 = vpop.f32.mrb[0].mxu0
      %v1370 = vadd.f32 %v1063, %v1369
      %v1371 = vpop.f32.mrb[0].mxu0
      %1372 = vmatprep.mubr.f32.mxu0 0.0
      %1373 = vmatmul.mubr.f32.gmra.mrb[0].mxu0 %v1097
      %v1374 = vpop.f32.mrb[0].mxu0
      %v1375 = vadd.f32 %v1063, %v1374
      %v1376 = vpop.f32.mrb[0].mxu0
      %1377 = vmatprep.mubr.f32.mxu0 0.0
      %1378 = vmatmul.mubr.f32.gmra.mrb[0].mxu0 %v1100
      %v1379 = vpop.f32.mrb[0].mxu0
      %v1380 = vadd.f32 %v1063, %v1379
      %v1381 = vpop.f32.mrb[0].mxu0
      %1382 = vmatprep.mubr.f32.mxu0 0.0
      %1383 = vmatmul.mubr.f32.gmra.mrb[0].mxu0 %v1103
      %v1384 = vpop.f32.mrb[0].mxu0
      %v1385 = vadd.f32 %v1063, %v1384
      %v1386 = vpop.f32.mrb[0].mxu0
      %1387 = vmatprep.mubr.f32.mxu0 0.0
      %1388 = vmatmul.mubr.f32.gmra.mrb[0].mxu0 %v1106
      %v1389 = vpop.f32.mrb[0].mxu0
      %v1390 = vadd.f32 %v1063, %v1389
      %v1391 = vpop.f32.mrb[0].mxu0
      %1392 = vmatprep.mubr.f32.mxu0 0.0
      %1393 = vmatmul.mubr.f32.gmra.mrb[0].mxu0 %v1109
      %v1394 = vpop.f32.mrb[0].mxu0
      %v1395 = vadd.f32 %v1063, %v1394
      %v1396 = vpop.f32.mrb[0].mxu0
      %1397 = vmatprep.mubr.f32.mxu0 0.0
      %1398 = vmatmul.mubr.f32.gmra.mrb[0].mxu0 %v1112
      %v1399 = vpop.f32.mrb[0].mxu0
      %v1400 = vadd.f32 %v1063, %v1399
      %v1401 = vpop.f32.mrb[0].mxu0
      %1402 = vmatprep.mubr.f32.mxu0 0.0
      %1403 = vmatmul.mubr.f32.gmra.mrb[0].mxu0 %v1115
      %v1404 = vpop.f32.mrb[0].mxu0
      %v1405 = vadd.f32 %v1063, %v1404
      %v1406 = vpop.f32.mrb[0].mxu0
      %1407 = vmatprep.mubr.f32.mxu0 0.0
      %1408 = vmatmul.mubr.f32.gmra.mrb[0].mxu0 %v1118
      %v1409 = vpop.f32.mrb[0].mxu0
      %v1410 = vadd.f32 %v1063, %v1409
      %v1411 = vpop.f32.mrb[0].mxu0
      %1412 = vmatprep.mubr.f32.mxu0 0.0
      %1413 = vmatmul.mubr.f32.gmra.mrb[0].mxu0 %v1121
      %v1414 = vpop.f32.mrb[0].mxu0
      %v1415 = vadd.f32 %v1063, %v1414
      %v1416 = vpop.f32.mrb[0].mxu0
      %1417 = vmatprep.mubr.f32.mxu0 0.0
      %1418 = vmatmul.mubr.f32.gmra.mrb[0].mxu0 %v1124
      %v1419 = vpop.f32.mrb[0].mxu0
      %v1420 = vadd.f32 %v1063, %v1419
      %v1421 = vpop.f32.mrb[0].mxu0
      %1422 = vmatprep.mubr.f32.mxu0 0.0
      %1423 = vmatmul.mubr.f32.gmra.mrb[0].mxu0 %v1127
      %v1424 = vpop.f32.mrb[0].mxu0
      %v1425 = vadd.f32 %v1063, %v1424
      %v1426 = vpop.f32.mrb[0].mxu0
      %1427 = vmatprep.mubr.f32.mxu0 0.0
      %1428 = vmatmul.mubr.f32.gmra.mrb[0].mxu0 %v1130
      %v1429 = vpop.f32.mrb[0].mxu0
      %v1430 = vadd.f32 %v1063, %v1429
      %v1431 = vpop.f32.mrb[0].mxu0
      %1432 = vmatprep.mubr.f32.mxu0 0.0
      %1433 = vmatmul.mubr.f32.gmra.mrb[0].mxu0 %v1133
      %v1434 = vpop.f32.mrb[0].mxu0
      %v1435 = vadd.f32 %v1063, %v1434
      %v1436 = vpop.f32.mrb[0].mxu0
      %1437 = vmatprep.mubr.f32.mxu0 0.0
      %1438 = vmatmul.mubr.f32.gmra.mrb[0].mxu0 %v1136
      %v1439 = vpop.f32.mrb[0].mxu0
      %v1440 = vadd.f32 %v1063, %v1439
      %v1441 = vpop.f32.mrb[0].mxu0
      %1442 = vmatprep.mubr.f32.mxu0 0.0
      %1443 = vmatmul.mubr.f32.gmra.mrb[0].mxu0 %v1139
      %v1444 = vpop.f32.mrb[0].mxu0
      %v1445 = vadd.f32 %v1063, %v1444
      %v1446 = vpop.f32.mrb[0].mxu0
      %1447 = vmatprep.mubr.f32.mxu0 0.0
      %1448 = vmatmul.mubr.f32.gmra.mrb[0].mxu0 %v1142
      %v1449 = vpop.f32.mrb[0].mxu0
      %v1450 = vadd.f32 %v1063, %v1449
      %v1451 = vpop.f32.mrb[0].mxu0
      %1452 = vmatprep.mubr.f32.mxu0 0.0
      %1453 = vmatmul.mubr.f32.gmra.mrb[0].mxu0 %v1145
      %v1454 = vpop.f32.mrb[0].mxu0
      %v1455 = vadd.f32 %v1063, %v1454
      %v1456 = vpop.f32.mrb[0].mxu0
      %1457 = vmatprep.mubr.f32.mxu0 0.0
      %1458 = vmatmul.mubr.f32.gmra.mrb[0].mxu0 %v1148
      %v1459 = vpop.f32.mrb[0].mxu0
      %v1460 = vadd.f32 %v1063, %v1459
      %v1461 = vpop.f32.mrb[0].mxu0
      %1462 = vmatprep.mubr.f32.mxu0 0.0
      %1463 = vmatmul.mubr.f32.gmra.mrb[0].mxu0 %v1151
      %v1464 = vpop.f32.mrb[0].mxu0
      %v1465 = vadd.f32 %v1063, %v1464
      %v1466 = vpop.f32.mrb[0].mxu0
      %1467 = vmatprep.mubr.f32.mxu0 0.0
      %1468 = vmatmul.mubr.f32.gmra.mrb[0].mxu0 %v1154
      %v1469 = vpop.f32.mrb[0].mxu0
      %v1470 = vadd.f32 %v1063, %v1469
      %v1471 = vpop.f32.mrb[0].mxu0
      %1472 = vmatprep.mubr.f32.mxu0 0.0
      %1473 = vmatmul.mubr.f32.gmra.mrb[0].mxu0 %v1157
      %v1474 = vpop.f32.mrb[0].mxu0
      %v1475 = vadd.f32 %v1063, %v1474
      %v1476 = vpop.f32.mrb[0].mxu0
      %1477 = vmatprep.mubr.f32.mxu0 0.0
      %1478 = vmatmul.mubr.f32.gmra.mrb[0].mxu0 %v1160
      %v1479 = vpop.f32.mrb[0].mxu0
      %v1480 = vadd.f32 %v1063, %v1479
      %v1481 = vpop.f32.mrb[0].mxu0
      %1482 = vmatprep.mubr.f32.mxu0 0.0
      %1483 = vmatmul.mubr.f32.gmra.mrb[0].mxu0 %v1163
      %v1484 = vpop.f32.mrb[0].mxu0
      %v1485 = vadd.f32 %v1063, %v1484
      %v1486 = vpop.f32.mrb[0].mxu0
      %1487 = vmatprep.mubr.f32.mxu0 0.0
      %1488 = vmatmul.mubr.f32.gmra.mrb[0].mxu0 %v1166
      %v1489 = vpop.f32.mrb[0].mxu0
      %v1490 = vadd.f32 %v1063, %v1489
      %v1491 = vpop.f32.mrb[0].mxu0
      %1492 = vmatprep.mubr.f32.mxu0 0.0
      %1493 = vmatmul.mubr.f32.gmra.mrb[0].mxu0 %v1169
      %v1494 = vpop.f32.mrb[0].mxu0
      %v1495 = vadd.f32 %v1063, %v1494
      %v1496 = vpop.f32.mrb[0].mxu0
      %1497 = vmatprep.mubr.f32.mxu0 0.0
      %1498 = vmatmul.mubr.f32.gmra.mrb[0].mxu0 %v1172
      %v1499 = vpop.f32.mrb[0].mxu0
      %v1500 = vadd.f32 %v1063, %v1499
      %v1501 = vpop.f32.mrb[0].mxu0
      %1502 = vmatprep.mubr.f32.mxu0 0.0
      %1503 = vmatmul.mubr.f32.gmra.mrb[0].mxu0 %v1175
      %v1504 = vpop.f32.mrb[0].mxu0
      %v1505 = vadd.f32 %v1063, %v1504
      %v1506 = vpop.f32.mrb[0].mxu0
      %1507 = vmatprep.mubr.f32.mxu0 0.0
      %1508 = vmatmul.mubr.f32.gmra.mrb[0].mxu0 %v1178
      %v1509 = vpop.f32.mrb[0].mxu0
      %v1510 = vadd.f32 %v1063, %v1509
      %v1511 = vpop.f32.mrb[0].mxu0
      %1512 = vmatprep.mubr.f32.mxu0 0.0
      %1513 = vmatmul.mubr.f32.gmra.mrb[0].mxu0 %v1181
      %v1514 = vpop.f32.mrb[0].mxu0
      %v1515 = vadd.f32 %v1063, %v1514
      %v1516 = vpop.f32.mrb[0].mxu0
      %1517 = vmatprep.mubr.f32.mxu0 0.0
      %1518 = vmatmul.mubr.f32.gmra.mrb[0].mxu0 %v1184
      %v1519 = vpop.f32.mrb[0].mxu0
      %v1520 = vadd.f32 %v1063, %v1519
      %v1521 = vpop.f32.mrb[0].mxu0
      %1522 = vmatprep.mubr.f32.mxu0 0.0
      %1523 = vmatmul.mubr.f32.gmra.mrb[0].mxu0 %v1187
      %v1524 = vpop.f32.mrb[0].mxu0
      %v1525 = vadd.f32 %v1063, %v1524
      %v1526 = vpop.f32.mrb[0].mxu0
      %1527 = vmatprep.mubr.f32.mxu0 0.0
      %1528 = vmatmul.mubr.f32.gmra.mrb[0].mxu0 %v1190
      %v1529 = vpop.f32.mrb[0].mxu0
      %v1530 = vadd.f32 %v1063, %v1529
      %v1531 = vpop.f32.mrb[0].mxu0
      %1532 = vmatprep.mubr.f32.mxu0 0.0
      %1533 = vmatmul.mubr.f32.gmra.mrb[0].mxu0 %v1193
      %v1534 = vpop.f32.mrb[0].mxu0
      %v1535 = vadd.f32 %v1063, %v1534
      %v1536 = vpop.f32.mrb[0].mxu0
      %1537 = vmatprep.mubr.f32.mxu0 0.0
      %1538 = vmatmul.mubr.f32.gmra.mrb[0].mxu0 %v1196
      %v1539 = vpop.f32.mrb[0].mxu0
      %v1540 = vadd.f32 %v1063, %v1539
      %v1541 = vpop.f32.mrb[0].mxu0
      %1542 = vmatprep.mubr.f32.mxu0 0.0
      %1543 = vmatmul.mubr.f32.gmra.mrb[0].mxu0 %v1199
      %v1544 = vpop.f32.mrb[0].mxu0
      %v1545 = vadd.f32 %v1063, %v1544
      %v1546 = vpop.f32.mrb[0].mxu0
      %1547 = vmatprep.mubr.f32.mxu0 0.0
      %1548 = vmatmul.mubr.f32.gmra.mrb[0].mxu0 %v1202
      %v1549 = vpop.f32.mrb[0].mxu0
      %v1550 = vadd.f32 %v1063, %v1549
      %v1551 = vpop.f32.mrb[0].mxu0
      %1552 = vmatprep.mubr.f32.mxu0 0.0
      %1553 = vmatmul.mubr.f32.gmra.mrb[0].mxu0 %v1205
      %v1554 = vpop.f32.mrb[0].mxu0
      %v1555 = vadd.f32 %v1063, %v1554
      %v1556 = vpop.f32.mrb[0].mxu0
      %1557 = vmatprep.mubr.f32.mxu0 0.0
      %1558 = vmatmul.mubr.f32.gmra.mrb[0].mxu0 %v1208
      %v1559 = vpop.f32.mrb[0].mxu0
      %v1560 = vadd.f32 %v1063, %v1559
      %v1561 = vpop.f32.mrb[0].mxu0
      %1562 = vmatprep.mubr.f32.mxu0 0.0
      %1563 = vmatmul.mubr.f32.gmra.mrb[0].mxu0 %v1211
      %v1564 = vpop.f32.mrb[0].mxu0
      %v1565 = vadd.f32 %v1063, %v1564
      %v1566 = vpop.f32.mrb[0].mxu0
      %1567 = vmatprep.mubr.f32.mxu0 0.0
      %1568 = vmatmul.mubr.f32.gmra.mrb[0].mxu0 %v1214
      %v1569 = vpop.f32.mrb[0].mxu0
      %v1570 = vadd.f32 %v1063, %v1569
      %v1571 = vpop.f32.mrb[0].mxu0
      %1572 = vmatprep.mubr.f32.mxu0 0.0
      %1573 = vmatmul.mubr.f32.gmra.mrb[0].mxu0 %v1217
      %v1574 = vpop.f32.mrb[0].mxu0
      %v1575 = vadd.f32 %v1063, %v1574
      %v1576 = vpop.f32.mrb[0].mxu0
      %1577 = vmatprep.mubr.f32.mxu0 0.0
      %1578 = vmatmul.mubr.f32.gmra.mrb[0].mxu0 %v1220
      %v1579 = vpop.f32.mrb[0].mxu0
      %v1580 = vadd.f32 %v1063, %v1579
      %v1581 = vpop.f32.mrb[0].mxu0
      %1582 = vmatprep.mubr.f32.mxu0 0.0
      %1583 = vmatmul.mubr.f32.gmra.mrb[0].mxu0 %v1223
      %v1584 = vpop.f32.mrb[0].mxu0
      %v1585 = vadd.f32 %v1063, %v1584
      %v1586 = vpop.f32.mrb[0].mxu0
      %1587 = vmatprep.mubr.f32.mxu0 0.0
      %1588 = vmatmul.mubr.f32.gmra.mrb[0].mxu0 %v1226
      %v1589 = vpop.f32.mrb[0].mxu0
      %v1590 = vadd.f32 %v1063, %v1589
      %v1591 = vpop.f32.mrb[0].mxu0
      %1592 = vmatprep.mubr.f32.mxu0 0.0
      %1593 = vmatmul.mubr.f32.gmra.mrb[0].mxu0 %v1229
      %v1594 = vpop.f32.mrb[0].mxu0
      %v1595 = vadd.f32 %v1063, %v1594
      %v1596 = vpop.f32.mrb[0].mxu0
      %1597 = vmatprep.mubr.f32.mxu0 0.0
      %1598 = vmatmul.mubr.f32.gmra.mrb[0].mxu0 %v1232
      %v1599 = vpop.f32.mrb[0].mxu0
      %v1600 = vadd.f32 %v1063, %v1599
      %v1601 = vpop.f32.mrb[0].mxu0
      %1602 = vmatprep.mubr.f32.mxu0 0.0
      %1603 = vmatmul.mubr.f32.gmra.mrb[0].mxu0 %v1235
      %v1604 = vpop.f32.mrb[0].mxu0
      %v1605 = vadd.f32 %v1063, %v1604
      %v1606 = vpop.f32.mrb[0].mxu0
      %1607 = vmatprep.mubr.f32.mxu0 0.0
      %1608 = vmatmul.mubr.f32.gmra.mrb[0].mxu0 %v1238
      %v1609 = vpop.f32.mrb[0].mxu0
      %v1610 = vadd.f32 %v1063, %v1609
      %v1611 = vpop.f32.mrb[0].mxu0
      %1612 = vmatprep.mubr.f32.mxu0 0.0
      %1613 = vmatmul.mubr.f32.gmra.mrb[0].mxu0 %v1241
      %v1614 = vpop.f32.mrb[0].mxu0
      %v1615 = vadd.f32 %v1063, %v1614
      %v1616 = vpop.f32.mrb[0].mxu0
      %1617 = vmatprep.mubr.f32.mxu0 0.0
      %1618 = vmatmul.mubr.f32.gmra.mrb[0].mxu0 %v1244
      %v1619 = vpop.f32.mrb[0].mxu0
      %v1620 = vadd.f32 %v1063, %v1619
      %v1621 = vpop.f32.mrb[0].mxu0
      %1622 = vmatprep.mubr.f32.mxu0 0.0
      %1623 = vmatmul.mubr.f32.gmra.mrb[0].mxu0 %v1247
      %v1624 = vpop.f32.mrb[0].mxu0
      %v1625 = vadd.f32 %v1063, %v1624
      %v1626 = vpop.f32.mrb[0].mxu0
      %1627 = vmatprep.mubr.f32.mxu0 0.0
      %1628 = vmatmul.mubr.f32.gmra.mrb[0].mxu0 %v1250
      %v1629 = vpop.f32.mrb[0].mxu0
      %v1630 = vadd.f32 %v1063, %v1629
      %v1631 = vpop.f32.mrb[0].mxu0
      %1632 = vmatprep.mubr.f32.mxu0 0.0
      %1633 = vmatmul.mubr.f32.gmra.mrb[0].mxu0 %v1253
      %v1634 = vpop.f32.mrb[0].mxu0
      %v1635 = vadd.f32 %v1063, %v1634
      %v1636 = vpop.f32.mrb[0].mxu0
      %1637 = vmatprep.mubr.f32.mxu0 0.0
      %1638 = vmatmul.mubr.f32.gmra.mrb[0].mxu0 %v1256
      %v1639 = vpop.f32.mrb[0].mxu0
      %v1640 = vadd.f32 %v1063, %v1639
      %v1641 = vpop.f32.mrb[0].mxu0
      %1642 = vdwg.mxu0
      %v1643 = vtanh.pop %v1325
      %v1644 = vtanh.pop %v1330
      %v1645 = vtanh.pop %v1335
      %v1646 = vtanh.pop %v1340
      %v1647 = vtanh.pop %v1345
      %v1648 = vtanh.pop %v1350
      %v1649 = vtanh.pop %v1355
      %v1650 = vtanh.pop %v1360
      %v1651 = vtanh.pop %v1365
      %v1652 = vtanh.pop %v1370
      %v1653 = vtanh.pop %v1375
      %v1654 = vtanh.pop %v1380
      %v1655 = vtanh.pop %v1385
      %v1656 = vtanh.pop %v1390
      %v1657 = vtanh.pop %v1395
      %v1658 = vtanh.pop %v1400
      %v1659 = vtanh.pop %v1405
      %v1660 = vtanh.pop %v1410
      %v1661 = vtanh.pop %v1415
      %v1662 = vtanh.pop %v1420
      %v1663 = vtanh.pop %v1425
      %v1664 = vtanh.pop %v1430
      %v1665 = vtanh.pop %v1435
      %v1666 = vtanh.pop %v1440
      %v1667 = vtanh.pop %v1445
      %v1668 = vtanh.pop %v1450
      %v1669 = vtanh.pop %v1455
      %v1670 = vtanh.pop %v1460
      %v1671 = vtanh.pop %v1465
      %v1672 = vtanh.pop %v1470
      %v1673 = vtanh.pop %v1475
      %v1674 = vtanh.pop %v1480
      %v1675 = vtanh.pop %v1485
      %v1676 = vtanh.pop %v1490
      %v1677 = vtanh.pop %v1495
      %v1678 = vtanh.pop %v1500
      %v1679 = vtanh.pop %v1505
      %v1680 = vtanh.pop %v1510
      %v1681 = vtanh.pop %v1515
      %v1682 = vtanh.pop %v1520
      %v1683 = vtanh.pop %v1525
      %v1684 = vtanh.pop %v1530
      %v1685 = vtanh.pop %v1535
      %v1686 = vtanh.pop %v1540
      %v1687 = vtanh.pop %v1545
      %v1688 = vtanh.pop %v1550
      %v1689 = vtanh.pop %v1555
      %v1690 = vtanh.pop %v1560
      %v1691 = vtanh.pop %v1565
      %v1692 = vtanh.pop %v1570
      %v1693 = vtanh.pop %v1575
      %v1694 = vtanh.pop %v1580
      %v1695 = vtanh.pop %v1585
      %v1696 = vtanh.pop %v1590
      %v1697 = vtanh.pop %v1595
      %v1698 = vtanh.pop %v1600
      %v1699 = vtanh.pop %v1605
      %v1700 = vtanh.pop %v1610
      %v1701 = vtanh.pop %v1615
      %v1702 = vtanh.pop %v1620
      %v1703 = vtanh.pop %v1625
      %v1704 = vtanh.pop %v1630
      %v1705 = vtanh.pop %v1635
      %v1706 = vtanh.pop %v1640
      %v1707 = vld [vmem:[%s5] sm:$0xff]
      %v1708 = vld [vmem:[%s5 + $0x8] sm:$0xff]
      %v1709 = vld [vmem:[%s5 + $0x10] sm:$0xff]
      %v1710 = vld [vmem:[%s5 + $0x18] sm:$0xff]
      %v1711 = vld [vmem:[%s6] sm:$0x1]
      %v1713 = vlaneseq
      %v1714 = vshrl.u32 %v1713, 7
      %v1715 = vsub.s32 0, %v1714
      %v1716 = vrot.slane %v1711, %v1715
      %v1719 = vsel %vm1065, %v1643, 0
      %v1722 = vsel %vm1065, %v1644, 0
      %v1725 = vsel %vm1065, %v1645, 0
      %v1728 = vsel %vm1065, %v1646, 0
      %v1731 = vsel %vm1065, %v1647, 0
      %v1734 = vsel %vm1065, %v1648, 0
      %v1737 = vsel %vm1065, %v1649, 0
      %v1740 = vsel %vm1065, %v1650, 0
      %v1743 = vsel %vm1065, %v1651, 0
      %v1746 = vsel %vm1065, %v1652, 0
      %v1749 = vsel %vm1065, %v1653, 0
      %v1752 = vsel %vm1065, %v1654, 0
      %v1755 = vsel %vm1065, %v1655, 0
      %v1758 = vsel %vm1065, %v1656, 0
      %v1761 = vsel %vm1065, %v1657, 0
      %v1764 = vsel %vm1065, %v1658, 0
      %v1767 = vsel %vm1065, %v1659, 0
      %v1770 = vsel %vm1065, %v1660, 0
      %v1773 = vsel %vm1065, %v1661, 0
      %v1776 = vsel %vm1065, %v1662, 0
      %v1779 = vsel %vm1065, %v1663, 0
      %v1782 = vsel %vm1065, %v1664, 0
      %v1785 = vsel %vm1065, %v1665, 0
      %v1788 = vsel %vm1065, %v1666, 0
      %v1791 = vsel %vm1065, %v1667, 0
      %v1794 = vsel %vm1065, %v1668, 0
      %v1797 = vsel %vm1065, %v1669, 0
      %v1800 = vsel %vm1065, %v1670, 0
      %v1803 = vsel %vm1065, %v1671, 0
      %v1806 = vsel %vm1065, %v1672, 0
      %v1809 = vsel %vm1065, %v1673, 0
      %v1812 = vsel %vm1065, %v1674, 0
      %v1815 = vsel %vm1065, %v1675, 0
      %v1818 = vsel %vm1065, %v1676, 0
      %v1821 = vsel %vm1065, %v1677, 0
      %v1824 = vsel %vm1065, %v1678, 0
      %v1827 = vsel %vm1065, %v1679, 0
      %v1830 = vsel %vm1065, %v1680, 0
      %v1833 = vsel %vm1065, %v1681, 0
      %v1836 = vsel %vm1065, %v1682, 0
      %v1839 = vsel %vm1065, %v1683, 0
      %v1842 = vsel %vm1065, %v1684, 0
      %v1845 = vsel %vm1065, %v1685, 0
      %v1848 = vsel %vm1065, %v1686, 0
      %v1851 = vsel %vm1065, %v1687, 0
      %v1854 = vsel %vm1065, %v1688, 0
      %v1857 = vsel %vm1065, %v1689, 0
      %v1860 = vsel %vm1065, %v1690, 0
      %v1863 = vsel %vm1065, %v1691, 0
      %v1866 = vsel %vm1065, %v1692, 0
      %v1869 = vsel %vm1065, %v1693, 0
      %v1872 = vsel %vm1065, %v1694, 0
      %v1875 = vsel %vm1065, %v1695, 0
      %v1878 = vsel %vm1065, %v1696, 0
      %v1881 = vsel %vm1065, %v1697, 0
      %v1884 = vsel %vm1065, %v1698, 0
      %v1887 = vsel %vm1065, %v1699, 0
      %v1890 = vsel %vm1065, %v1700, 0
      %v1893 = vsel %vm1065, %v1701, 0
      %v1896 = vsel %vm1065, %v1702, 0
      %v1899 = vsel %vm1065, %v1703, 0
      %v1902 = vsel %vm1065, %v1704, 0
      %v1905 = vsel %vm1065, %v1705, 0
      %v1908 = vsel %vm1065, %v1706, 0
      %1910 = vmatprep.subr.mxu0 0.0
      %1911 = vmatpush1.msra.mxu0 %v1707
      %1912 = vmatprep.subr.mxu0 0.0
      %1913 = vmatpush1.msra.mxu0 %v1708
      %1914 = vmatprep.subr.mxu0 0.0
      %1915 = vmatpush1.msra.mxu0 %v1709
      %1916 = vmatprep.subr.mxu0 0.0
      %1917 = vmatpush1.msra.mxu0 %v1710
      %1918 = vmatprep.subr.mxu0 0.0
      %1919 = vmatpush1.msra.mxu0 0.0
      %1920 = vmatprep.subr.mxu0 0.0
      %1921 = vmatpush1.msra.mxu0 0.0
      %1922 = vmatprep.subr.mxu0 0.0
      %1923 = vmatpush1.msra.mxu0 0.0
      %1924 = vmatprep.subr.mxu0 0.0
      %1925 = vmatpush1.msra.mxu0 0.0
      %1926 = vmatprep.subr.mxu0 0.0
      %1927 = vmatpush1.msra.mxu0 0.0
      %1928 = vmatprep.subr.mxu0 0.0
      %1929 = vmatpush1.msra.mxu0 0.0
      %1930 = vmatprep.subr.mxu0 0.0
      %1931 = vmatpush1.msra.mxu0 0.0
      %1932 = vmatprep.subr.mxu0 0.0
      %1933 = vmatpush1.msra.mxu0 0.0
      %1934 = vmatprep.subr.mxu0 0.0
      %1935 = vmatpush1.msra.mxu0 0.0
      %1936 = vmatprep.subr.mxu0 0.0
      %1937 = vmatpush1.msra.mxu0 0.0
      %1938 = vmatprep.subr.mxu0 0.0
      %1939 = vmatpush1.msra.mxu0 0.0
      %1940 = vmatprep.subr.mxu0 0.0
      %1941 = vmatpush1.msra.mxu0 0.0
      %1942 = vmatprep.subr.mxu0 0.0
      %1943 = vmatpush1.msra.mxu0 0.0
      %1944 = vmatprep.subr.mxu0 0.0
      %1945 = vmatpush1.msra.mxu0 0.0
      %1946 = vmatprep.subr.mxu0 0.0
      %1947 = vmatpush1.msra.mxu0 0.0
      %1948 = vmatprep.subr.mxu0 0.0
      %1949 = vmatpush1.msra.mxu0 0.0
      %1950 = vmatprep.subr.mxu0 0.0
      %1951 = vmatpush1.msra.mxu0 0.0
      %1952 = vmatprep.subr.mxu0 0.0
      %1953 = vmatpush1.msra.mxu0 0.0
      %1954 = vmatprep.subr.mxu0 0.0
      %1955 = vmatpush1.msra.mxu0 0.0
      %1956 = vmatprep.subr.mxu0 0.0
      %1957 = vmatpush1.msra.mxu0 0.0
      %1958 = vmatprep.subr.mxu0 0.0
      %1959 = vmatpush1.msra.mxu0 0.0
      %1960 = vmatprep.subr.mxu0 0.0
      %1961 = vmatpush1.msra.mxu0 0.0
      %1962 = vmatprep.subr.mxu0 0.0
      %1963 = vmatpush1.msra.mxu0 0.0
      %1964 = vmatprep.subr.mxu0 0.0
      %1965 = vmatpush1.msra.mxu0 0.0
      %1966 = vmatprep.subr.mxu0 0.0
      %1967 = vmatpush1.msra.mxu0 0.0
      %1968 = vmatprep.subr.mxu0 0.0
      %1969 = vmatpush1.msra.mxu0 0.0
      %1970 = vmatprep.subr.mxu0 0.0
      %1971 = vmatpush1.msra.mxu0 0.0
      %1972 = vmatprep.subr.mxu0 0.0
      %1973 = vmatpush1.msra.mxu0 0.0
      %1974 = vmatprep.mubr.f32.mxu0 0.0
      %1975 = vmatmul.mubr.f32.gmra.mrb[0].mxu0 %v1719
      %v1976 = vpop.f32.mrb[0].mxu0
      %v1977 = vadd.f32 %v1716, %v1976
      %v1978 = vpop.f32.mrb[0].mxu0
      %1979 = vmatprep.mubr.f32.mxu0 0.0
      %1980 = vmatmul.mubr.f32.gmra.mrb[0].mxu0 %v1722
      %v1981 = vpop.f32.mrb[0].mxu0
      %v1982 = vadd.f32 %v1716, %v1981
      %v1983 = vpop.f32.mrb[0].mxu0
      %1984 = vmatprep.mubr.f32.mxu0 0.0
      %1985 = vmatmul.mubr.f32.gmra.mrb[0].mxu0 %v1725
      %v1986 = vpop.f32.mrb[0].mxu0
      %v1987 = vadd.f32 %v1716, %v1986
      %v1988 = vpop.f32.mrb[0].mxu0
      %1989 = vmatprep.mubr.f32.mxu0 0.0
      %1990 = vmatmul.mubr.f32.gmra.mrb[0].mxu0 %v1728
      %v1991 = vpop.f32.mrb[0].mxu0
      %v1992 = vadd.f32 %v1716, %v1991
      %v1993 = vpop.f32.mrb[0].mxu0
      %1994 = vmatprep.mubr.f32.mxu0 0.0
      %1995 = vmatmul.mubr.f32.gmra.mrb[0].mxu0 %v1731
      %v1996 = vpop.f32.mrb[0].mxu0
      %v1997 = vadd.f32 %v1716, %v1996
      %v1998 = vpop.f32.mrb[0].mxu0
      %1999 = vmatprep.mubr.f32.mxu0 0.0
      %2000 = vmatmul.mubr.f32.gmra.mrb[0].mxu0 %v1734
      %v2001 = vpop.f32.mrb[0].mxu0
      %v2002 = vadd.f32 %v1716, %v2001
      %v2003 = vpop.f32.mrb[0].mxu0
      %2004 = vmatprep.mubr.f32.mxu0 0.0
      %2005 = vmatmul.mubr.f32.gmra.mrb[0].mxu0 %v1737
      %v2006 = vpop.f32.mrb[0].mxu0
      %v2007 = vadd.f32 %v1716, %v2006
      %v2008 = vpop.f32.mrb[0].mxu0
      %2009 = vmatprep.mubr.f32.mxu0 0.0
      %2010 = vmatmul.mubr.f32.gmra.mrb[0].mxu0 %v1740
      %v2011 = vpop.f32.mrb[0].mxu0
      %v2012 = vadd.f32 %v1716, %v2011
      %v2013 = vpop.f32.mrb[0].mxu0
      %2014 = vmatprep.mubr.f32.mxu0 0.0
      %2015 = vmatmul.mubr.f32.gmra.mrb[0].mxu0 %v1743
      %v2016 = vpop.f32.mrb[0].mxu0
      %v2017 = vadd.f32 %v1716, %v2016
      %v2018 = vpop.f32.mrb[0].mxu0
      %2019 = vmatprep.mubr.f32.mxu0 0.0
      %2020 = vmatmul.mubr.f32.gmra.mrb[0].mxu0 %v1746
      %v2021 = vpop.f32.mrb[0].mxu0
      %v2022 = vadd.f32 %v1716, %v2021
      %v2023 = vpop.f32.mrb[0].mxu0
      %2024 = vmatprep.mubr.f32.mxu0 0.0
      %2025 = vmatmul.mubr.f32.gmra.mrb[0].mxu0 %v1749
      %v2026 = vpop.f32.mrb[0].mxu0
      %v2027 = vadd.f32 %v1716, %v2026
      %v2028 = vpop.f32.mrb[0].mxu0
      %2029 = vmatprep.mubr.f32.mxu0 0.0
      %2030 = vmatmul.mubr.f32.gmra.mrb[0].mxu0 %v1752
      %v2031 = vpop.f32.mrb[0].mxu0
      %v2032 = vadd.f32 %v1716, %v2031
      %v2033 = vpop.f32.mrb[0].mxu0
      %2034 = vmatprep.mubr.f32.mxu0 0.0
      %2035 = vmatmul.mubr.f32.gmra.mrb[0].mxu0 %v1755
      %v2036 = vpop.f32.mrb[0].mxu0
      %v2037 = vadd.f32 %v1716, %v2036
      %v2038 = vpop.f32.mrb[0].mxu0
      %2039 = vmatprep.mubr.f32.mxu0 0.0
      %2040 = vmatmul.mubr.f32.gmra.mrb[0].mxu0 %v1758
      %v2041 = vpop.f32.mrb[0].mxu0
      %v2042 = vadd.f32 %v1716, %v2041
      %v2043 = vpop.f32.mrb[0].mxu0
      %2044 = vmatprep.mubr.f32.mxu0 0.0
      %2045 = vmatmul.mubr.f32.gmra.mrb[0].mxu0 %v1761
      %v2046 = vpop.f32.mrb[0].mxu0
      %v2047 = vadd.f32 %v1716, %v2046
      %v2048 = vpop.f32.mrb[0].mxu0
      %2049 = vmatprep.mubr.f32.mxu0 0.0
      %2050 = vmatmul.mubr.f32.gmra.mrb[0].mxu0 %v1764
      %v2051 = vpop.f32.mrb[0].mxu0
      %v2052 = vadd.f32 %v1716, %v2051
      %v2053 = vpop.f32.mrb[0].mxu0
      %2054 = vmatprep.mubr.f32.mxu0 0.0
      %2055 = vmatmul.mubr.f32.gmra.mrb[0].mxu0 %v1767
      %v2056 = vpop.f32.mrb[0].mxu0
      %v2057 = vadd.f32 %v1716, %v2056
      %v2058 = vpop.f32.mrb[0].mxu0
      %2059 = vmatprep.mubr.f32.mxu0 0.0
      %2060 = vmatmul.mubr.f32.gmra.mrb[0].mxu0 %v1770
      %v2061 = vpop.f32.mrb[0].mxu0
      %v2062 = vadd.f32 %v1716, %v2061
      %v2063 = vpop.f32.mrb[0].mxu0
      %2064 = vmatprep.mubr.f32.mxu0 0.0
      %2065 = vmatmul.mubr.f32.gmra.mrb[0].mxu0 %v1773
      %v2066 = vpop.f32.mrb[0].mxu0
      %v2067 = vadd.f32 %v1716, %v2066
      %v2068 = vpop.f32.mrb[0].mxu0
      %2069 = vmatprep.mubr.f32.mxu0 0.0
      %2070 = vmatmul.mubr.f32.gmra.mrb[0].mxu0 %v1776
      %v2071 = vpop.f32.mrb[0].mxu0
      %v2072 = vadd.f32 %v1716, %v2071
      %v2073 = vpop.f32.mrb[0].mxu0
      %2074 = vmatprep.mubr.f32.mxu0 0.0
      %2075 = vmatmul.mubr.f32.gmra.mrb[0].mxu0 %v1779
      %v2076 = vpop.f32.mrb[0].mxu0
      %v2077 = vadd.f32 %v1716, %v2076
      %v2078 = vpop.f32.mrb[0].mxu0
      %2079 = vmatprep.mubr.f32.mxu0 0.0
      %2080 = vmatmul.mubr.f32.gmra.mrb[0].mxu0 %v1782
      %v2081 = vpop.f32.mrb[0].mxu0
      %v2082 = vadd.f32 %v1716, %v2081
      %v2083 = vpop.f32.mrb[0].mxu0
      %2084 = vmatprep.mubr.f32.mxu0 0.0
      %2085 = vmatmul.mubr.f32.gmra.mrb[0].mxu0 %v1785
      %v2086 = vpop.f32.mrb[0].mxu0
      %v2087 = vadd.f32 %v1716, %v2086
      %v2088 = vpop.f32.mrb[0].mxu0
      %2089 = vmatprep.mubr.f32.mxu0 0.0
      %2090 = vmatmul.mubr.f32.gmra.mrb[0].mxu0 %v1788
      %v2091 = vpop.f32.mrb[0].mxu0
      %v2092 = vadd.f32 %v1716, %v2091
      %v2093 = vpop.f32.mrb[0].mxu0
      %2094 = vmatprep.mubr.f32.mxu0 0.0
      %2095 = vmatmul.mubr.f32.gmra.mrb[0].mxu0 %v1791
      %v2096 = vpop.f32.mrb[0].mxu0
      %v2097 = vadd.f32 %v1716, %v2096
      %v2098 = vpop.f32.mrb[0].mxu0
      %2099 = vmatprep.mubr.f32.mxu0 0.0
      %2100 = vmatmul.mubr.f32.gmra.mrb[0].mxu0 %v1794
      %v2101 = vpop.f32.mrb[0].mxu0
      %v2102 = vadd.f32 %v1716, %v2101
      %v2103 = vpop.f32.mrb[0].mxu0
      %2104 = vmatprep.mubr.f32.mxu0 0.0
      %2105 = vmatmul.mubr.f32.gmra.mrb[0].mxu0 %v1797
      %v2106 = vpop.f32.mrb[0].mxu0
      %v2107 = vadd.f32 %v1716, %v2106
      %v2108 = vpop.f32.mrb[0].mxu0
      %2109 = vmatprep.mubr.f32.mxu0 0.0
      %2110 = vmatmul.mubr.f32.gmra.mrb[0].mxu0 %v1800
      %v2111 = vpop.f32.mrb[0].mxu0
      %v2112 = vadd.f32 %v1716, %v2111
      %v2113 = vpop.f32.mrb[0].mxu0
      %2114 = vmatprep.mubr.f32.mxu0 0.0
      %2115 = vmatmul.mubr.f32.gmra.mrb[0].mxu0 %v1803
      %v2116 = vpop.f32.mrb[0].mxu0
      %v2117 = vadd.f32 %v1716, %v2116
      %v2118 = vpop.f32.mrb[0].mxu0
      %2119 = vmatprep.mubr.f32.mxu0 0.0
      %2120 = vmatmul.mubr.f32.gmra.mrb[0].mxu0 %v1806
      %v2121 = vpop.f32.mrb[0].mxu0
      %v2122 = vadd.f32 %v1716, %v2121
      %v2123 = vpop.f32.mrb[0].mxu0
      %2124 = vmatprep.mubr.f32.mxu0 0.0
      %2125 = vmatmul.mubr.f32.gmra.mrb[0].mxu0 %v1809
      %v2126 = vpop.f32.mrb[0].mxu0
      %v2127 = vadd.f32 %v1716, %v2126
      %v2128 = vpop.f32.mrb[0].mxu0
      %2129 = vmatprep.mubr.f32.mxu0 0.0
      %2130 = vmatmul.mubr.f32.gmra.mrb[0].mxu0 %v1812
      %v2131 = vpop.f32.mrb[0].mxu0
      %v2132 = vadd.f32 %v1716, %v2131
      %v2133 = vpop.f32.mrb[0].mxu0
      %2134 = vmatprep.mubr.f32.mxu0 0.0
      %2135 = vmatmul.mubr.f32.gmra.mrb[0].mxu0 %v1815
      %v2136 = vpop.f32.mrb[0].mxu0
      %v2137 = vadd.f32 %v1716, %v2136
      %v2138 = vpop.f32.mrb[0].mxu0
      %2139 = vmatprep.mubr.f32.mxu0 0.0
      %2140 = vmatmul.mubr.f32.gmra.mrb[0].mxu0 %v1818
      %v2141 = vpop.f32.mrb[0].mxu0
      %v2142 = vadd.f32 %v1716, %v2141
      %v2143 = vpop.f32.mrb[0].mxu0
      %2144 = vmatprep.mubr.f32.mxu0 0.0
      %2145 = vmatmul.mubr.f32.gmra.mrb[0].mxu0 %v1821
      %v2146 = vpop.f32.mrb[0].mxu0
      %v2147 = vadd.f32 %v1716, %v2146
      %v2148 = vpop.f32.mrb[0].mxu0
      %2149 = vmatprep.mubr.f32.mxu0 0.0
      %2150 = vmatmul.mubr.f32.gmra.mrb[0].mxu0 %v1824
      %v2151 = vpop.f32.mrb[0].mxu0
      %v2152 = vadd.f32 %v1716, %v2151
      %v2153 = vpop.f32.mrb[0].mxu0
      %2154 = vmatprep.mubr.f32.mxu0 0.0
      %2155 = vmatmul.mubr.f32.gmra.mrb[0].mxu0 %v1827
      %v2156 = vpop.f32.mrb[0].mxu0
      %v2157 = vadd.f32 %v1716, %v2156
      %v2158 = vpop.f32.mrb[0].mxu0
      %2159 = vmatprep.mubr.f32.mxu0 0.0
      %2160 = vmatmul.mubr.f32.gmra.mrb[0].mxu0 %v1830
      %v2161 = vpop.f32.mrb[0].mxu0
      %v2162 = vadd.f32 %v1716, %v2161
      %v2163 = vpop.f32.mrb[0].mxu0
      %2164 = vmatprep.mubr.f32.mxu0 0.0
      %2165 = vmatmul.mubr.f32.gmra.mrb[0].mxu0 %v1833
      %v2166 = vpop.f32.mrb[0].mxu0
      %v2167 = vadd.f32 %v1716, %v2166
      %v2168 = vpop.f32.mrb[0].mxu0
      %2169 = vmatprep.mubr.f32.mxu0 0.0
      %2170 = vmatmul.mubr.f32.gmra.mrb[0].mxu0 %v1836
      %v2171 = vpop.f32.mrb[0].mxu0
      %v2172 = vadd.f32 %v1716, %v2171
      %v2173 = vpop.f32.mrb[0].mxu0
      %2174 = vmatprep.mubr.f32.mxu0 0.0
      %2175 = vmatmul.mubr.f32.gmra.mrb[0].mxu0 %v1839
      %v2176 = vpop.f32.mrb[0].mxu0
      %v2177 = vadd.f32 %v1716, %v2176
      %v2178 = vpop.f32.mrb[0].mxu0
      %2179 = vmatprep.mubr.f32.mxu0 0.0
      %2180 = vmatmul.mubr.f32.gmra.mrb[0].mxu0 %v1842
      %v2181 = vpop.f32.mrb[0].mxu0
      %v2182 = vadd.f32 %v1716, %v2181
      %v2183 = vpop.f32.mrb[0].mxu0
      %2184 = vmatprep.mubr.f32.mxu0 0.0
      %2185 = vmatmul.mubr.f32.gmra.mrb[0].mxu0 %v1845
      %v2186 = vpop.f32.mrb[0].mxu0
      %v2187 = vadd.f32 %v1716, %v2186
      %v2188 = vpop.f32.mrb[0].mxu0
      %2189 = vmatprep.mubr.f32.mxu0 0.0
      %2190 = vmatmul.mubr.f32.gmra.mrb[0].mxu0 %v1848
      %v2191 = vpop.f32.mrb[0].mxu0
      %v2192 = vadd.f32 %v1716, %v2191
      %v2193 = vpop.f32.mrb[0].mxu0
      %2194 = vmatprep.mubr.f32.mxu0 0.0
      %2195 = vmatmul.mubr.f32.gmra.mrb[0].mxu0 %v1851
      %v2196 = vpop.f32.mrb[0].mxu0
      %v2197 = vadd.f32 %v1716, %v2196
      %v2198 = vpop.f32.mrb[0].mxu0
      %2199 = vmatprep.mubr.f32.mxu0 0.0
      %2200 = vmatmul.mubr.f32.gmra.mrb[0].mxu0 %v1854
      %v2201 = vpop.f32.mrb[0].mxu0
      %v2202 = vadd.f32 %v1716, %v2201
      %v2203 = vpop.f32.mrb[0].mxu0
      %2204 = vmatprep.mubr.f32.mxu0 0.0
      %2205 = vmatmul.mubr.f32.gmra.mrb[0].mxu0 %v1857
      %v2206 = vpop.f32.mrb[0].mxu0
      %v2207 = vadd.f32 %v1716, %v2206
      %v2208 = vpop.f32.mrb[0].mxu0
      %2209 = vmatprep.mubr.f32.mxu0 0.0
      %2210 = vmatmul.mubr.f32.gmra.mrb[0].mxu0 %v1860
      %v2211 = vpop.f32.mrb[0].mxu0
      %v2212 = vadd.f32 %v1716, %v2211
      %v2213 = vpop.f32.mrb[0].mxu0
      %2214 = vmatprep.mubr.f32.mxu0 0.0
      %2215 = vmatmul.mubr.f32.gmra.mrb[0].mxu0 %v1863
      %v2216 = vpop.f32.mrb[0].mxu0
      %v2217 = vadd.f32 %v1716, %v2216
      %v2218 = vpop.f32.mrb[0].mxu0
      %2219 = vmatprep.mubr.f32.mxu0 0.0
      %2220 = vmatmul.mubr.f32.gmra.mrb[0].mxu0 %v1866
      %v2221 = vpop.f32.mrb[0].mxu0
      %v2222 = vadd.f32 %v1716, %v2221
      %v2223 = vpop.f32.mrb[0].mxu0
      %2224 = vmatprep.mubr.f32.mxu0 0.0
      %2225 = vmatmul.mubr.f32.gmra.mrb[0].mxu0 %v1869
      %v2226 = vpop.f32.mrb[0].mxu0
      %v2227 = vadd.f32 %v1716, %v2226
      %v2228 = vpop.f32.mrb[0].mxu0
      %2229 = vmatprep.mubr.f32.mxu0 0.0
      %2230 = vmatmul.mubr.f32.gmra.mrb[0].mxu0 %v1872
      %v2231 = vpop.f32.mrb[0].mxu0
      %v2232 = vadd.f32 %v1716, %v2231
      %v2233 = vpop.f32.mrb[0].mxu0
      %2234 = vmatprep.mubr.f32.mxu0 0.0
      %2235 = vmatmul.mubr.f32.gmra.mrb[0].mxu0 %v1875
      %v2236 = vpop.f32.mrb[0].mxu0
      %v2237 = vadd.f32 %v1716, %v2236
      %v2238 = vpop.f32.mrb[0].mxu0
      %2239 = vmatprep.mubr.f32.mxu0 0.0
      %2240 = vmatmul.mubr.f32.gmra.mrb[0].mxu0 %v1878
      %v2241 = vpop.f32.mrb[0].mxu0
      %v2242 = vadd.f32 %v1716, %v2241
      %v2243 = vpop.f32.mrb[0].mxu0
      %2244 = vmatprep.mubr.f32.mxu0 0.0
      %2245 = vmatmul.mubr.f32.gmra.mrb[0].mxu0 %v1881
      %v2246 = vpop.f32.mrb[0].mxu0
      %v2247 = vadd.f32 %v1716, %v2246
      %v2248 = vpop.f32.mrb[0].mxu0
      %2249 = vmatprep.mubr.f32.mxu0 0.0
      %2250 = vmatmul.mubr.f32.gmra.mrb[0].mxu0 %v1884
      %v2251 = vpop.f32.mrb[0].mxu0
      %v2252 = vadd.f32 %v1716, %v2251
      %v2253 = vpop.f32.mrb[0].mxu0
      %2254 = vmatprep.mubr.f32.mxu0 0.0
      %2255 = vmatmul.mubr.f32.gmra.mrb[0].mxu0 %v1887
      %v2256 = vpop.f32.mrb[0].mxu0
      %v2257 = vadd.f32 %v1716, %v2256
      %v2258 = vpop.f32.mrb[0].mxu0
      %2259 = vmatprep.mubr.f32.mxu0 0.0
      %2260 = vmatmul.mubr.f32.gmra.mrb[0].mxu0 %v1890
      %v2261 = vpop.f32.mrb[0].mxu0
      %v2262 = vadd.f32 %v1716, %v2261
      %v2263 = vpop.f32.mrb[0].mxu0
      %2264 = vmatprep.mubr.f32.mxu0 0.0
      %2265 = vmatmul.mubr.f32.gmra.mrb[0].mxu0 %v1893
      %v2266 = vpop.f32.mrb[0].mxu0
      %v2267 = vadd.f32 %v1716, %v2266
      %v2268 = vpop.f32.mrb[0].mxu0
      %2269 = vmatprep.mubr.f32.mxu0 0.0
      %2270 = vmatmul.mubr.f32.gmra.mrb[0].mxu0 %v1896
      %v2271 = vpop.f32.mrb[0].mxu0
      %v2272 = vadd.f32 %v1716, %v2271
      %v2273 = vpop.f32.mrb[0].mxu0
      %2274 = vmatprep.mubr.f32.mxu0 0.0
      %2275 = vmatmul.mubr.f32.gmra.mrb[0].mxu0 %v1899
      %v2276 = vpop.f32.mrb[0].mxu0
      %v2277 = vadd.f32 %v1716, %v2276
      %v2278 = vpop.f32.mrb[0].mxu0
      %2279 = vmatprep.mubr.f32.mxu0 0.0
      %2280 = vmatmul.mubr.f32.gmra.mrb[0].mxu0 %v1902
      %v2281 = vpop.f32.mrb[0].mxu0
      %v2282 = vadd.f32 %v1716, %v2281
      %v2283 = vpop.f32.mrb[0].mxu0
      %2284 = vmatprep.mubr.f32.mxu0 0.0
      %2285 = vmatmul.mubr.f32.gmra.mrb[0].mxu0 %v1905
      %v2286 = vpop.f32.mrb[0].mxu0
      %v2287 = vadd.f32 %v1716, %v2286
      %v2288 = vpop.f32.mrb[0].mxu0
      %2289 = vmatprep.mubr.f32.mxu0 0.0
      %2290 = vmatmul.mubr.f32.gmra.mrb[0].mxu0 %v1908
      %v2291 = vpop.f32.mrb[0].mxu0
      %v2292 = vadd.f32 %v1716, %v2291
      %v2293 = vpop.f32.mrb[0].mxu0
      %2294 = vdwg.mxu0
      %v2295 = vtanh.pop %v1977
      %v2296 = vtanh.pop %v1982
      %v2297 = vtanh.pop %v1987
      %v2298 = vtanh.pop %v1992
      %v2299 = vtanh.pop %v1997
      %v2300 = vtanh.pop %v2002
      %v2301 = vtanh.pop %v2007
      %v2302 = vtanh.pop %v2012
      %v2303 = vtanh.pop %v2017
      %v2304 = vtanh.pop %v2022
      %v2305 = vtanh.pop %v2027
      %v2306 = vtanh.pop %v2032
      %v2307 = vtanh.pop %v2037
      %v2308 = vtanh.pop %v2042
      %v2309 = vtanh.pop %v2047
      %v2310 = vtanh.pop %v2052
      %v2311 = vtanh.pop %v2057
      %v2312 = vtanh.pop %v2062
      %v2313 = vtanh.pop %v2067
      %v2314 = vtanh.pop %v2072
      %v2315 = vtanh.pop %v2077
      %v2316 = vtanh.pop %v2082
      %v2317 = vtanh.pop %v2087
      %v2318 = vtanh.pop %v2092
      %v2319 = vtanh.pop %v2097
      %v2320 = vtanh.pop %v2102
      %v2321 = vtanh.pop %v2107
      %v2322 = vtanh.pop %v2112
      %v2323 = vtanh.pop %v2117
      %v2324 = vtanh.pop %v2122
      %v2325 = vtanh.pop %v2127
      %v2326 = vtanh.pop %v2132
      %v2327 = vtanh.pop %v2137
      %v2328 = vtanh.pop %v2142
      %v2329 = vtanh.pop %v2147
      %v2330 = vtanh.pop %v2152
      %v2331 = vtanh.pop %v2157
      %v2332 = vtanh.pop %v2162
      %v2333 = vtanh.pop %v2167
      %v2334 = vtanh.pop %v2172
      %v2335 = vtanh.pop %v2177
      %v2336 = vtanh.pop %v2182
      %v2337 = vtanh.pop %v2187
      %v2338 = vtanh.pop %v2192
      %v2339 = vtanh.pop %v2197
      %v2340 = vtanh.pop %v2202
      %v2341 = vtanh.pop %v2207
      %v2342 = vtanh.pop %v2212
      %v2343 = vtanh.pop %v2217
      %v2344 = vtanh.pop %v2222
      %v2345 = vtanh.pop %v2227
      %v2346 = vtanh.pop %v2232
      %v2347 = vtanh.pop %v2237
      %v2348 = vtanh.pop %v2242
      %v2349 = vtanh.pop %v2247
      %v2350 = vtanh.pop %v2252
      %v2351 = vtanh.pop %v2257
      %v2352 = vtanh.pop %v2262
      %v2353 = vtanh.pop %v2267
      %v2354 = vtanh.pop %v2272
      %v2355 = vtanh.pop %v2277
      %v2356 = vtanh.pop %v2282
      %v2357 = vtanh.pop %v2287
      %v2358 = vtanh.pop %v2292
      %v2359 = vld [vmem:[%s7] sm:$0xff]
      %v2360 = vld [vmem:[%s7 + $0x8] sm:$0xff]
      %v2361 = vld [vmem:[%s7 + $0x10] sm:$0xff]
      %v2362 = vld [vmem:[%s7 + $0x18] sm:$0xff]
      %v2363 = vld [vmem:[%s8] sm:$0x1]
      %v2365 = vlaneseq
      %v2366 = vshrl.u32 %v2365, 7
      %v2367 = vsub.s32 0, %v2366
      %v2368 = vrot.slane %v2363, %v2367
      %v2371 = vsel %vm1065, %v2295, 0
      %v2374 = vsel %vm1065, %v2296, 0
      %v2377 = vsel %vm1065, %v2297, 0
      %v2380 = vsel %vm1065, %v2298, 0
      %v2383 = vsel %vm1065, %v2299, 0
      %v2386 = vsel %vm1065, %v2300, 0
      %v2389 = vsel %vm1065, %v2301, 0
      %v2392 = vsel %vm1065, %v2302, 0
      %v2395 = vsel %vm1065, %v2303, 0
      %v2398 = vsel %vm1065, %v2304, 0
      %v2401 = vsel %vm1065, %v2305, 0
      %v2404 = vsel %vm1065, %v2306, 0
      %v2407 = vsel %vm1065, %v2307, 0
      %v2410 = vsel %vm1065, %v2308, 0
      %v2413 = vsel %vm1065, %v2309, 0
      %v2416 = vsel %vm1065, %v2310, 0
      %v2419 = vsel %vm1065, %v2311, 0
      %v2422 = vsel %vm1065, %v2312, 0
      %v2425 = vsel %vm1065, %v2313, 0
      %v2428 = vsel %vm1065, %v2314, 0
      %v2431 = vsel %vm1065, %v2315, 0
      %v2434 = vsel %vm1065, %v2316, 0
      %v2437 = vsel %vm1065, %v2317, 0
      %v2440 = vsel %vm1065, %v2318, 0
      %v2443 = vsel %vm1065, %v2319, 0
      %v2446 = vsel %vm1065, %v2320, 0
      %v2449 = vsel %vm1065, %v2321, 0
      %v2452 = vsel %vm1065, %v2322, 0
      %v2455 = vsel %vm1065, %v2323, 0
      %v2458 = vsel %vm1065, %v2324, 0
      %v2461 = vsel %vm1065, %v2325, 0
      %v2464 = vsel %vm1065, %v2326, 0
      %v2467 = vsel %vm1065, %v2327, 0
      %v2470 = vsel %vm1065, %v2328, 0
      %v2473 = vsel %vm1065, %v2329, 0
      %v2476 = vsel %vm1065, %v2330, 0
      %v2479 = vsel %vm1065, %v2331, 0
      %v2482 = vsel %vm1065, %v2332, 0
      %v2485 = vsel %vm1065, %v2333, 0
      %v2488 = vsel %vm1065, %v2334, 0
      %v2491 = vsel %vm1065, %v2335, 0
      %v2494 = vsel %vm1065, %v2336, 0
      %v2497 = vsel %vm1065, %v2337, 0
      %v2500 = vsel %vm1065, %v2338, 0
      %v2503 = vsel %vm1065, %v2339, 0
      %v2506 = vsel %vm1065, %v2340, 0
      %v2509 = vsel %vm1065, %v2341, 0
      %v2512 = vsel %vm1065, %v2342, 0
      %v2515 = vsel %vm1065, %v2343, 0
      %v2518 = vsel %vm1065, %v2344, 0
      %v2521 = vsel %vm1065, %v2345, 0
      %v2524 = vsel %vm1065, %v2346, 0
      %v2527 = vsel %vm1065, %v2347, 0
      %v2530 = vsel %vm1065, %v2348, 0
      %v2533 = vsel %vm1065, %v2349, 0
      %v2536 = vsel %vm1065, %v2350, 0
      %v2539 = vsel %vm1065, %v2351, 0
      %v2542 = vsel %vm1065, %v2352, 0
      %v2545 = vsel %vm1065, %v2353, 0
      %v2548 = vsel %vm1065, %v2354, 0
      %v2551 = vsel %vm1065, %v2355, 0
      %v2554 = vsel %vm1065, %v2356, 0
      %v2557 = vsel %vm1065, %v2357, 0
      %v2560 = vsel %vm1065, %v2358, 0
      %2562 = vmatprep.subr.mxu0 0.0
      %2563 = vmatpush1.msra.mxu0 %v2359
      %2564 = vmatprep.subr.mxu0 0.0
      %2565 = vmatpush1.msra.mxu0 %v2360
      %2566 = vmatprep.subr.mxu0 0.0
      %2567 = vmatpush1.msra.mxu0 %v2361
      %2568 = vmatprep.subr.mxu0 0.0
      %2569 = vmatpush1.msra.mxu0 %v2362
      %2570 = vmatprep.subr.mxu0 0.0
      %2571 = vmatpush1.msra.mxu0 0.0
      %2572 = vmatprep.subr.mxu0 0.0
      %2573 = vmatpush1.msra.mxu0 0.0
      %2574 = vmatprep.subr.mxu0 0.0
      %2575 = vmatpush1.msra.mxu0 0.0
      %2576 = vmatprep.subr.mxu0 0.0
      %2577 = vmatpush1.msra.mxu0 0.0
      %2578 = vmatprep.subr.mxu0 0.0
      %2579 = vmatpush1.msra.mxu0 0.0
      %2580 = vmatprep.subr.mxu0 0.0
      %2581 = vmatpush1.msra.mxu0 0.0
      %2582 = vmatprep.subr.mxu0 0.0
      %2583 = vmatpush1.msra.mxu0 0.0
      %2584 = vmatprep.subr.mxu0 0.0
      %2585 = vmatpush1.msra.mxu0 0.0
      %2586 = vmatprep.subr.mxu0 0.0
      %2587 = vmatpush1.msra.mxu0 0.0
      %2588 = vmatprep.subr.mxu0 0.0
      %2589 = vmatpush1.msra.mxu0 0.0
      %2590 = vmatprep.subr.mxu0 0.0
      %2591 = vmatpush1.msra.mxu0 0.0
      %2592 = vmatprep.subr.mxu0 0.0
      %2593 = vmatpush1.msra.mxu0 0.0
      %2594 = vmatprep.subr.mxu0 0.0
      %2595 = vmatpush1.msra.mxu0 0.0
      %2596 = vmatprep.subr.mxu0 0.0
      %2597 = vmatpush1.msra.mxu0 0.0
      %2598 = vmatprep.subr.mxu0 0.0
      %2599 = vmatpush1.msra.mxu0 0.0
      %2600 = vmatprep.subr.mxu0 0.0
      %2601 = vmatpush1.msra.mxu0 0.0
      %2602 = vmatprep.subr.mxu0 0.0
      %2603 = vmatpush1.msra.mxu0 0.0
      %2604 = vmatprep.subr.mxu0 0.0
      %2605 = vmatpush1.msra.mxu0 0.0
      %2606 = vmatprep.subr.mxu0 0.0
      %2607 = vmatpush1.msra.mxu0 0.0
      %2608 = vmatprep.subr.mxu0 0.0
      %2609 = vmatpush1.msra.mxu0 0.0
      %2610 = vmatprep.subr.mxu0 0.0
      %2611 = vmatpush1.msra.mxu0 0.0
      %2612 = vmatprep.subr.mxu0 0.0
      %2613 = vmatpush1.msra.mxu0 0.0
      %2614 = vmatprep.subr.mxu0 0.0
      %2615 = vmatpush1.msra.mxu0 0.0
      %2616 = vmatprep.subr.mxu0 0.0
      %2617 = vmatpush1.msra.mxu0 0.0
      %2618 = vmatprep.subr.mxu0 0.0
      %2619 = vmatpush1.msra.mxu0 0.0
      %2620 = vmatprep.subr.mxu0 0.0
      %2621 = vmatpush1.msra.mxu0 0.0
      %2622 = vmatprep.subr.mxu0 0.0
      %2623 = vmatpush1.msra.mxu0 0.0
      %2624 = vmatprep.subr.mxu0 0.0
      %2625 = vmatpush1.msra.mxu0 0.0
      %2626 = vmatprep.mubr.f32.mxu0 0.0
      %2627 = vmatmul.mubr.f32.gmra.mrb[0].mxu0 %v2371
      %v2628 = vpop.f32.mrb[0].mxu0
      %v2629 = vadd.f32 %v2368, %v2628
      %v2630 = vpop.f32.mrb[0].mxu0
      %2631 = vmatprep.mubr.f32.mxu0 0.0
      %2632 = vmatmul.mubr.f32.gmra.mrb[0].mxu0 %v2374
      %v2633 = vpop.f32.mrb[0].mxu0
      %v2634 = vadd.f32 %v2368, %v2633
      %v2635 = vpop.f32.mrb[0].mxu0
      %2636 = vmatprep.mubr.f32.mxu0 0.0
      %2637 = vmatmul.mubr.f32.gmra.mrb[0].mxu0 %v2377
      %v2638 = vpop.f32.mrb[0].mxu0
      %v2639 = vadd.f32 %v2368, %v2638
      %v2640 = vpop.f32.mrb[0].mxu0
      %2641 = vmatprep.mubr.f32.mxu0 0.0
      %2642 = vmatmul.mubr.f32.gmra.mrb[0].mxu0 %v2380
      %v2643 = vpop.f32.mrb[0].mxu0
      %v2644 = vadd.f32 %v2368, %v2643
      %v2645 = vpop.f32.mrb[0].mxu0
      %2646 = vmatprep.mubr.f32.mxu0 0.0
      %2647 = vmatmul.mubr.f32.gmra.mrb[0].mxu0 %v2383
      %v2648 = vpop.f32.mrb[0].mxu0
      %v2649 = vadd.f32 %v2368, %v2648
      %v2650 = vpop.f32.mrb[0].mxu0
      %2651 = vmatprep.mubr.f32.mxu0 0.0
      %2652 = vmatmul.mubr.f32.gmra.mrb[0].mxu0 %v2386
      %v2653 = vpop.f32.mrb[0].mxu0
      %v2654 = vadd.f32 %v2368, %v2653
      %v2655 = vpop.f32.mrb[0].mxu0
      %2656 = vmatprep.mubr.f32.mxu0 0.0
      %2657 = vmatmul.mubr.f32.gmra.mrb[0].mxu0 %v2389
      %v2658 = vpop.f32.mrb[0].mxu0
      %v2659 = vadd.f32 %v2368, %v2658
      %v2660 = vpop.f32.mrb[0].mxu0
      %2661 = vmatprep.mubr.f32.mxu0 0.0
      %2662 = vmatmul.mubr.f32.gmra.mrb[0].mxu0 %v2392
      %v2663 = vpop.f32.mrb[0].mxu0
      %v2664 = vadd.f32 %v2368, %v2663
      %v2665 = vpop.f32.mrb[0].mxu0
      %2666 = vmatprep.mubr.f32.mxu0 0.0
      %2667 = vmatmul.mubr.f32.gmra.mrb[0].mxu0 %v2395
      %v2668 = vpop.f32.mrb[0].mxu0
      %v2669 = vadd.f32 %v2368, %v2668
      %v2670 = vpop.f32.mrb[0].mxu0
      %2671 = vmatprep.mubr.f32.mxu0 0.0
      %2672 = vmatmul.mubr.f32.gmra.mrb[0].mxu0 %v2398
      %v2673 = vpop.f32.mrb[0].mxu0
      %v2674 = vadd.f32 %v2368, %v2673
      %v2675 = vpop.f32.mrb[0].mxu0
      %2676 = vmatprep.mubr.f32.mxu0 0.0
      %2677 = vmatmul.mubr.f32.gmra.mrb[0].mxu0 %v2401
      %v2678 = vpop.f32.mrb[0].mxu0
      %v2679 = vadd.f32 %v2368, %v2678
      %v2680 = vpop.f32.mrb[0].mxu0
      %2681 = vmatprep.mubr.f32.mxu0 0.0
      %2682 = vmatmul.mubr.f32.gmra.mrb[0].mxu0 %v2404
      %v2683 = vpop.f32.mrb[0].mxu0
      %v2684 = vadd.f32 %v2368, %v2683
      %v2685 = vpop.f32.mrb[0].mxu0
      %2686 = vmatprep.mubr.f32.mxu0 0.0
      %2687 = vmatmul.mubr.f32.gmra.mrb[0].mxu0 %v2407
      %v2688 = vpop.f32.mrb[0].mxu0
      %v2689 = vadd.f32 %v2368, %v2688
      %v2690 = vpop.f32.mrb[0].mxu0
      %2691 = vmatprep.mubr.f32.mxu0 0.0
      %2692 = vmatmul.mubr.f32.gmra.mrb[0].mxu0 %v2410
      %v2693 = vpop.f32.mrb[0].mxu0
      %v2694 = vadd.f32 %v2368, %v2693
      %v2695 = vpop.f32.mrb[0].mxu0
      %2696 = vmatprep.mubr.f32.mxu0 0.0
      %2697 = vmatmul.mubr.f32.gmra.mrb[0].mxu0 %v2413
      %v2698 = vpop.f32.mrb[0].mxu0
      %v2699 = vadd.f32 %v2368, %v2698
      %v2700 = vpop.f32.mrb[0].mxu0
      %2701 = vmatprep.mubr.f32.mxu0 0.0
      %2702 = vmatmul.mubr.f32.gmra.mrb[0].mxu0 %v2416
      %v2703 = vpop.f32.mrb[0].mxu0
      %v2704 = vadd.f32 %v2368, %v2703
      %v2705 = vpop.f32.mrb[0].mxu0
      %2706 = vmatprep.mubr.f32.mxu0 0.0
      %2707 = vmatmul.mubr.f32.gmra.mrb[0].mxu0 %v2419
      %v2708 = vpop.f32.mrb[0].mxu0
      %v2709 = vadd.f32 %v2368, %v2708
      %v2710 = vpop.f32.mrb[0].mxu0
      %2711 = vmatprep.mubr.f32.mxu0 0.0
      %2712 = vmatmul.mubr.f32.gmra.mrb[0].mxu0 %v2422
      %v2713 = vpop.f32.mrb[0].mxu0
      %v2714 = vadd.f32 %v2368, %v2713
      %v2715 = vpop.f32.mrb[0].mxu0
      %2716 = vmatprep.mubr.f32.mxu0 0.0
      %2717 = vmatmul.mubr.f32.gmra.mrb[0].mxu0 %v2425
      %v2718 = vpop.f32.mrb[0].mxu0
      %v2719 = vadd.f32 %v2368, %v2718
      %v2720 = vpop.f32.mrb[0].mxu0
      %2721 = vmatprep.mubr.f32.mxu0 0.0
      %2722 = vmatmul.mubr.f32.gmra.mrb[0].mxu0 %v2428
      %v2723 = vpop.f32.mrb[0].mxu0
      %v2724 = vadd.f32 %v2368, %v2723
      %v2725 = vpop.f32.mrb[0].mxu0
      %2726 = vmatprep.mubr.f32.mxu0 0.0
      %2727 = vmatmul.mubr.f32.gmra.mrb[0].mxu0 %v2431
      %v2728 = vpop.f32.mrb[0].mxu0
      %v2729 = vadd.f32 %v2368, %v2728
      %v2730 = vpop.f32.mrb[0].mxu0
      %2731 = vmatprep.mubr.f32.mxu0 0.0
      %2732 = vmatmul.mubr.f32.gmra.mrb[0].mxu0 %v2434
      %v2733 = vpop.f32.mrb[0].mxu0
      %v2734 = vadd.f32 %v2368, %v2733
      %v2735 = vpop.f32.mrb[0].mxu0
      %2736 = vmatprep.mubr.f32.mxu0 0.0
      %2737 = vmatmul.mubr.f32.gmra.mrb[0].mxu0 %v2437
      %v2738 = vpop.f32.mrb[0].mxu0
      %v2739 = vadd.f32 %v2368, %v2738
      %v2740 = vpop.f32.mrb[0].mxu0
      %2741 = vmatprep.mubr.f32.mxu0 0.0
      %2742 = vmatmul.mubr.f32.gmra.mrb[0].mxu0 %v2440
      %v2743 = vpop.f32.mrb[0].mxu0
      %v2744 = vadd.f32 %v2368, %v2743
      %v2745 = vpop.f32.mrb[0].mxu0
      %2746 = vmatprep.mubr.f32.mxu0 0.0
      %2747 = vmatmul.mubr.f32.gmra.mrb[0].mxu0 %v2443
      %v2748 = vpop.f32.mrb[0].mxu0
      %v2749 = vadd.f32 %v2368, %v2748
      %v2750 = vpop.f32.mrb[0].mxu0
      %2751 = vmatprep.mubr.f32.mxu0 0.0
      %2752 = vmatmul.mubr.f32.gmra.mrb[0].mxu0 %v2446
      %v2753 = vpop.f32.mrb[0].mxu0
      %v2754 = vadd.f32 %v2368, %v2753
      %v2755 = vpop.f32.mrb[0].mxu0
      %2756 = vmatprep.mubr.f32.mxu0 0.0
      %2757 = vmatmul.mubr.f32.gmra.mrb[0].mxu0 %v2449
      %v2758 = vpop.f32.mrb[0].mxu0
      %v2759 = vadd.f32 %v2368, %v2758
      %v2760 = vpop.f32.mrb[0].mxu0
      %2761 = vmatprep.mubr.f32.mxu0 0.0
      %2762 = vmatmul.mubr.f32.gmra.mrb[0].mxu0 %v2452
      %v2763 = vpop.f32.mrb[0].mxu0
      %v2764 = vadd.f32 %v2368, %v2763
      %v2765 = vpop.f32.mrb[0].mxu0
      %2766 = vmatprep.mubr.f32.mxu0 0.0
      %2767 = vmatmul.mubr.f32.gmra.mrb[0].mxu0 %v2455
      %v2768 = vpop.f32.mrb[0].mxu0
      %v2769 = vadd.f32 %v2368, %v2768
      %v2770 = vpop.f32.mrb[0].mxu0
      %2771 = vmatprep.mubr.f32.mxu0 0.0
      %2772 = vmatmul.mubr.f32.gmra.mrb[0].mxu0 %v2458
      %v2773 = vpop.f32.mrb[0].mxu0
      %v2774 = vadd.f32 %v2368, %v2773
      %v2775 = vpop.f32.mrb[0].mxu0
      %2776 = vmatprep.mubr.f32.mxu0 0.0
      %2777 = vmatmul.mubr.f32.gmra.mrb[0].mxu0 %v2461
      %v2778 = vpop.f32.mrb[0].mxu0
      %v2779 = vadd.f32 %v2368, %v2778
      %v2780 = vpop.f32.mrb[0].mxu0
      %2781 = vmatprep.mubr.f32.mxu0 0.0
      %2782 = vmatmul.mubr.f32.gmra.mrb[0].mxu0 %v2464
      %v2783 = vpop.f32.mrb[0].mxu0
      %v2784 = vadd.f32 %v2368, %v2783
      %v2785 = vpop.f32.mrb[0].mxu0
      %2786 = vmatprep.mubr.f32.mxu0 0.0
      %2787 = vmatmul.mubr.f32.gmra.mrb[0].mxu0 %v2467
      %v2788 = vpop.f32.mrb[0].mxu0
      %v2789 = vadd.f32 %v2368, %v2788
      %v2790 = vpop.f32.mrb[0].mxu0
      %2791 = vmatprep.mubr.f32.mxu0 0.0
      %2792 = vmatmul.mubr.f32.gmra.mrb[0].mxu0 %v2470
      %v2793 = vpop.f32.mrb[0].mxu0
      %v2794 = vadd.f32 %v2368, %v2793
      %v2795 = vpop.f32.mrb[0].mxu0
      %2796 = vmatprep.mubr.f32.mxu0 0.0
      %2797 = vmatmul.mubr.f32.gmra.mrb[0].mxu0 %v2473
      %v2798 = vpop.f32.mrb[0].mxu0
      %v2799 = vadd.f32 %v2368, %v2798
      %v2800 = vpop.f32.mrb[0].mxu0
      %2801 = vmatprep.mubr.f32.mxu0 0.0
      %2802 = vmatmul.mubr.f32.gmra.mrb[0].mxu0 %v2476
      %v2803 = vpop.f32.mrb[0].mxu0
      %v2804 = vadd.f32 %v2368, %v2803
      %v2805 = vpop.f32.mrb[0].mxu0
      %2806 = vmatprep.mubr.f32.mxu0 0.0
      %2807 = vmatmul.mubr.f32.gmra.mrb[0].mxu0 %v2479
      %v2808 = vpop.f32.mrb[0].mxu0
      %v2809 = vadd.f32 %v2368, %v2808
      %v2810 = vpop.f32.mrb[0].mxu0
      %2811 = vmatprep.mubr.f32.mxu0 0.0
      %2812 = vmatmul.mubr.f32.gmra.mrb[0].mxu0 %v2482
      %v2813 = vpop.f32.mrb[0].mxu0
      %v2814 = vadd.f32 %v2368, %v2813
      %v2815 = vpop.f32.mrb[0].mxu0
      %2816 = vmatprep.mubr.f32.mxu0 0.0
      %2817 = vmatmul.mubr.f32.gmra.mrb[0].mxu0 %v2485
      %v2818 = vpop.f32.mrb[0].mxu0
      %v2819 = vadd.f32 %v2368, %v2818
      %v2820 = vpop.f32.mrb[0].mxu0
      %2821 = vmatprep.mubr.f32.mxu0 0.0
      %2822 = vmatmul.mubr.f32.gmra.mrb[0].mxu0 %v2488
      %v2823 = vpop.f32.mrb[0].mxu0
      %v2824 = vadd.f32 %v2368, %v2823
      %v2825 = vpop.f32.mrb[0].mxu0
      %2826 = vmatprep.mubr.f32.mxu0 0.0
      %2827 = vmatmul.mubr.f32.gmra.mrb[0].mxu0 %v2491
      %v2828 = vpop.f32.mrb[0].mxu0
      %v2829 = vadd.f32 %v2368, %v2828
      %v2830 = vpop.f32.mrb[0].mxu0
      %2831 = vmatprep.mubr.f32.mxu0 0.0
      %2832 = vmatmul.mubr.f32.gmra.mrb[0].mxu0 %v2494
      %v2833 = vpop.f32.mrb[0].mxu0
      %v2834 = vadd.f32 %v2368, %v2833
      %v2835 = vpop.f32.mrb[0].mxu0
      %2836 = vmatprep.mubr.f32.mxu0 0.0
      %2837 = vmatmul.mubr.f32.gmra.mrb[0].mxu0 %v2497
      %v2838 = vpop.f32.mrb[0].mxu0
      %v2839 = vadd.f32 %v2368, %v2838
      %v2840 = vpop.f32.mrb[0].mxu0
      %2841 = vmatprep.mubr.f32.mxu0 0.0
      %2842 = vmatmul.mubr.f32.gmra.mrb[0].mxu0 %v2500
      %v2843 = vpop.f32.mrb[0].mxu0
      %v2844 = vadd.f32 %v2368, %v2843
      %v2845 = vpop.f32.mrb[0].mxu0
      %2846 = vmatprep.mubr.f32.mxu0 0.0
      %2847 = vmatmul.mubr.f32.gmra.mrb[0].mxu0 %v2503
      %v2848 = vpop.f32.mrb[0].mxu0
      %v2849 = vadd.f32 %v2368, %v2848
      %v2850 = vpop.f32.mrb[0].mxu0
      %2851 = vmatprep.mubr.f32.mxu0 0.0
      %2852 = vmatmul.mubr.f32.gmra.mrb[0].mxu0 %v2506
      %v2853 = vpop.f32.mrb[0].mxu0
      %v2854 = vadd.f32 %v2368, %v2853
      %v2855 = vpop.f32.mrb[0].mxu0
      %2856 = vmatprep.mubr.f32.mxu0 0.0
      %2857 = vmatmul.mubr.f32.gmra.mrb[0].mxu0 %v2509
      %v2858 = vpop.f32.mrb[0].mxu0
      %v2859 = vadd.f32 %v2368, %v2858
      %v2860 = vpop.f32.mrb[0].mxu0
      %2861 = vmatprep.mubr.f32.mxu0 0.0
      %2862 = vmatmul.mubr.f32.gmra.mrb[0].mxu0 %v2512
      %v2863 = vpop.f32.mrb[0].mxu0
      %v2864 = vadd.f32 %v2368, %v2863
      %v2865 = vpop.f32.mrb[0].mxu0
      %2866 = vmatprep.mubr.f32.mxu0 0.0
      %2867 = vmatmul.mubr.f32.gmra.mrb[0].mxu0 %v2515
      %v2868 = vpop.f32.mrb[0].mxu0
      %v2869 = vadd.f32 %v2368, %v2868
      %v2870 = vpop.f32.mrb[0].mxu0
      %2871 = vmatprep.mubr.f32.mxu0 0.0
      %2872 = vmatmul.mubr.f32.gmra.mrb[0].mxu0 %v2518
      %v2873 = vpop.f32.mrb[0].mxu0
      %v2874 = vadd.f32 %v2368, %v2873
      %v2875 = vpop.f32.mrb[0].mxu0
      %2876 = vmatprep.mubr.f32.mxu0 0.0
      %2877 = vmatmul.mubr.f32.gmra.mrb[0].mxu0 %v2521
      %v2878 = vpop.f32.mrb[0].mxu0
      %v2879 = vadd.f32 %v2368, %v2878
      %v2880 = vpop.f32.mrb[0].mxu0
      %2881 = vmatprep.mubr.f32.mxu0 0.0
      %2882 = vmatmul.mubr.f32.gmra.mrb[0].mxu0 %v2524
      %v2883 = vpop.f32.mrb[0].mxu0
      %v2884 = vadd.f32 %v2368, %v2883
      %v2885 = vpop.f32.mrb[0].mxu0
      %2886 = vmatprep.mubr.f32.mxu0 0.0
      %2887 = vmatmul.mubr.f32.gmra.mrb[0].mxu0 %v2527
      %v2888 = vpop.f32.mrb[0].mxu0
      %v2889 = vadd.f32 %v2368, %v2888
      %v2890 = vpop.f32.mrb[0].mxu0
      %2891 = vmatprep.mubr.f32.mxu0 0.0
      %2892 = vmatmul.mubr.f32.gmra.mrb[0].mxu0 %v2530
      %v2893 = vpop.f32.mrb[0].mxu0
      %v2894 = vadd.f32 %v2368, %v2893
      %v2895 = vpop.f32.mrb[0].mxu0
      %2896 = vmatprep.mubr.f32.mxu0 0.0
      %2897 = vmatmul.mubr.f32.gmra.mrb[0].mxu0 %v2533
      %v2898 = vpop.f32.mrb[0].mxu0
      %v2899 = vadd.f32 %v2368, %v2898
      %v2900 = vpop.f32.mrb[0].mxu0
      %2901 = vmatprep.mubr.f32.mxu0 0.0
      %2902 = vmatmul.mubr.f32.gmra.mrb[0].mxu0 %v2536
      %v2903 = vpop.f32.mrb[0].mxu0
      %v2904 = vadd.f32 %v2368, %v2903
      %v2905 = vpop.f32.mrb[0].mxu0
      %2906 = vmatprep.mubr.f32.mxu0 0.0
      %2907 = vmatmul.mubr.f32.gmra.mrb[0].mxu0 %v2539
      %v2908 = vpop.f32.mrb[0].mxu0
      %v2909 = vadd.f32 %v2368, %v2908
      %v2910 = vpop.f32.mrb[0].mxu0
      %2911 = vmatprep.mubr.f32.mxu0 0.0
      %2912 = vmatmul.mubr.f32.gmra.mrb[0].mxu0 %v2542
      %v2913 = vpop.f32.mrb[0].mxu0
      %v2914 = vadd.f32 %v2368, %v2913
      %v2915 = vpop.f32.mrb[0].mxu0
      %2916 = vmatprep.mubr.f32.mxu0 0.0
      %2917 = vmatmul.mubr.f32.gmra.mrb[0].mxu0 %v2545
      %v2918 = vpop.f32.mrb[0].mxu0
      %v2919 = vadd.f32 %v2368, %v2918
      %v2920 = vpop.f32.mrb[0].mxu0
      %2921 = vmatprep.mubr.f32.mxu0 0.0
      %2922 = vmatmul.mubr.f32.gmra.mrb[0].mxu0 %v2548
      %v2923 = vpop.f32.mrb[0].mxu0
      %v2924 = vadd.f32 %v2368, %v2923
      %v2925 = vpop.f32.mrb[0].mxu0
      %2926 = vmatprep.mubr.f32.mxu0 0.0
      %2927 = vmatmul.mubr.f32.gmra.mrb[0].mxu0 %v2551
      %v2928 = vpop.f32.mrb[0].mxu0
      %v2929 = vadd.f32 %v2368, %v2928
      %v2930 = vpop.f32.mrb[0].mxu0
      %2931 = vmatprep.mubr.f32.mxu0 0.0
      %2932 = vmatmul.mubr.f32.gmra.mrb[0].mxu0 %v2554
      %v2933 = vpop.f32.mrb[0].mxu0
      %v2934 = vadd.f32 %v2368, %v2933
      %v2935 = vpop.f32.mrb[0].mxu0
      %2936 = vmatprep.mubr.f32.mxu0 0.0
      %2937 = vmatmul.mubr.f32.gmra.mrb[0].mxu0 %v2557
      %v2938 = vpop.f32.mrb[0].mxu0
      %v2939 = vadd.f32 %v2368, %v2938
      %v2940 = vpop.f32.mrb[0].mxu0
      %2941 = vmatprep.mubr.f32.mxu0 0.0
      %2942 = vmatmul.mubr.f32.gmra.mrb[0].mxu0 %v2560
      %v2943 = vpop.f32.mrb[0].mxu0
      %v2944 = vadd.f32 %v2368, %v2943
      %v2945 = vpop.f32.mrb[0].mxu0
      %2946 = vdwg.mxu0
      %2947 = vst [vmem:[%s334] sm:$0xff] %v2629
      %2948 = vst [vmem:[%s334 + $0x8] sm:$0xff] %v2634
      %2949 = vst [vmem:[%s334 + $0x10] sm:$0xff] %v2639
      %2950 = vst [vmem:[%s334 + $0x18] sm:$0xff] %v2644
      %2951 = vst [vmem:[%s334 + $0x20] sm:$0xff] %v2649
      %2952 = vst [vmem:[%s334 + $0x28] sm:$0xff] %v2654
      %2953 = vst [vmem:[%s334 + $0x30] sm:$0xff] %v2659
      %2954 = vst [vmem:[%s334 + $0x38] sm:$0xff] %v2664
      %2955 = vst [vmem:[%s334 + $0x40] sm:$0xff] %v2669
      %2956 = vst [vmem:[%s334 + $0x48] sm:$0xff] %v2674
      %2957 = vst [vmem:[%s334 + $0x50] sm:$0xff] %v2679
      %2958 = vst [vmem:[%s334 + $0x58] sm:$0xff] %v2684
      %2959 = vst [vmem:[%s334 + $0x60] sm:$0xff] %v2689
      %2960 = vst [vmem:[%s334 + $0x68] sm:$0xff] %v2694
      %2961 = vst [vmem:[%s334 + $0x70] sm:$0xff] %v2699
      %2962 = vst [vmem:[%s334 + $0x78] sm:$0xff] %v2704
      %2963 = vst [vmem:[%s334 + $0x80] sm:$0xff] %v2709
      %2964 = vst [vmem:[%s334 + $0x88] sm:$0xff] %v2714
      %2965 = vst [vmem:[%s334 + $0x90] sm:$0xff] %v2719
      %2966 = vst [vmem:[%s334 + $0x98] sm:$0xff] %v2724
      %2967 = vst [vmem:[%s334 + $0xa0] sm:$0xff] %v2729
      %2968 = vst [vmem:[%s334 + $0xa8] sm:$0xff] %v2734
      %2969 = vst [vmem:[%s334 + $0xb0] sm:$0xff] %v2739
      %2970 = vst [vmem:[%s334 + $0xb8] sm:$0xff] %v2744
      %2971 = vst [vmem:[%s334 + $0xc0] sm:$0xff] %v2749
      %2972 = vst [vmem:[%s334 + $0xc8] sm:$0xff] %v2754
      %2973 = vst [vmem:[%s334 + $0xd0] sm:$0xff] %v2759
      %2974 = vst [vmem:[%s334 + $0xd8] sm:$0xff] %v2764
      %2975 = vst [vmem:[%s334 + $0xe0] sm:$0xff] %v2769
      %2976 = vst [vmem:[%s334 + $0xe8] sm:$0xff] %v2774
      %2977 = vst [vmem:[%s334 + $0xf0] sm:$0xff] %v2779
      %2978 = vst [vmem:[%s334 + $0xf8] sm:$0xff] %v2784
      %2979 = vst [vmem:[%s334 + $0x100] sm:$0xff] %v2789
      %2980 = vst [vmem:[%s334 + $0x108] sm:$0xff] %v2794
      %2981 = vst [vmem:[%s334 + $0x110] sm:$0xff] %v2799
      %2982 = vst [vmem:[%s334 + $0x118] sm:$0xff] %v2804
      %2983 = vst [vmem:[%s334 + $0x120] sm:$0xff] %v2809
      %2984 = vst [vmem:[%s334 + $0x128] sm:$0xff] %v2814
      %2985 = vst [vmem:[%s334 + $0x130] sm:$0xff] %v2819
      %2986 = vst [vmem:[%s334 + $0x138] sm:$0xff] %v2824
      %2987 = vst [vmem:[%s334 + $0x140] sm:$0xff] %v2829
      %2988 = vst [vmem:[%s334 + $0x148] sm:$0xff] %v2834
      %2989 = vst [vmem:[%s334 + $0x150] sm:$0xff] %v2839
      %2990 = vst [vmem:[%s334 + $0x158] sm:$0xff] %v2844
      %2991 = vst [vmem:[%s334 + $0x160] sm:$0xff] %v2849
      %2992 = vst [vmem:[%s334 + $0x168] sm:$0xff] %v2854
      %2993 = vst [vmem:[%s334 + $0x170] sm:$0xff] %v2859
      %2994 = vst [vmem:[%s334 + $0x178] sm:$0xff] %v2864
      %2995 = vst [vmem:[%s334 + $0x180] sm:$0xff] %v2869
      %2996 = vst [vmem:[%s334 + $0x188] sm:$0xff] %v2874
      %2997 = vst [vmem:[%s334 + $0x190] sm:$0xff] %v2879
      %2998 = vst [vmem:[%s334 + $0x198] sm:$0xff] %v2884
      %2999 = vst [vmem:[%s334 + $0x1a0] sm:$0xff] %v2889
      %3000 = vst [vmem:[%s334 + $0x1a8] sm:$0xff] %v2894
      %3001 = vst [vmem:[%s334 + $0x1b0] sm:$0xff] %v2899
      %3002 = vst [vmem:[%s334 + $0x1b8] sm:$0xff] %v2904
      %3003 = vst [vmem:[%s334 + $0x1c0] sm:$0xff] %v2909
      %3004 = vst [vmem:[%s334 + $0x1c8] sm:$0xff] %v2914
      %3005 = vst [vmem:[%s334 + $0x1d0] sm:$0xff] %v2919
      %3006 = vst [vmem:[%s334 + $0x1d8] sm:$0xff] %v2924
      %3007 = vst [vmem:[%s334 + $0x1e0] sm:$0xff] %v2929
      %3008 = vst [vmem:[%s334 + $0x1e8] sm:$0xff] %v2934
      %3009 = vst [vmem:[%s334 + $0x1f0] sm:$0xff] %v2939
      %3010 = vst [vmem:[%s334 + $0x1f8] sm:$0xff] %v2944
      %s3011 = smul.u32 64, %s20
      %p3012 = scmp.lt.s32.totalorder %s3011, 127
      %s3013 = scalar_select %p3012, %s3011, 127
      %s3014 = smul.addr %s3013, 8
      %s3015 = scalar_lea.vmem %s9, %s3014
      // Predicated region
      $region57: #{net_forward.1} parent=55 // pred_check
        %p3016 = pneg %p232
      $region58: #{net_forward.1} parent=55 // pred_check_branch
        %3018 = sbr.rel (%p3016) target = $region60
      $region59: #{net_forward.1} parent=55 // pred_region
        %s3019 = smul.u32 64, %s20
      $region60: #{net_forward.1} parent=55 // pred_fallthru
        _
    $region56: #{net_forward.1} parent=5 // pred_fallthru
      _
    %p3020 = scmp.le.s32.totalorder 2, %s15
    // Predicated region
    $region61: #{net_forward.1} parent=5 // pred_check
      %p3021 = pneg %p3020
    $region62: #{net_forward.1} parent=5 // pred_check_branch
      %3023 = sbr.rel (%p3021) target = $region64
    $region63: #{net_forward.1} parent=5 // pred_region
      %s3024 = ssub.s32 %s15, 2
      // Predicated region
      $region65: #{net_forward.1} parent=63 // pred_check
        %p3025 = pneg %p238
      $region66: #{net_forward.1} parent=63 // pred_check_branch
        %3027 = sbr.rel (%p3025) target = $region68
      $region67: #{net_forward.1} parent=63 // pred_region
        %s3028 = smul.u32 64, %s21
        %p3029 = scmp.lt.s32.totalorder %s3028, 127
        %s3030 = scalar_select %p3029, %s3028, 127
        %s3031 = smul.addr %s3030, 8
        %s3032 = scalar_lea.vmem %s9, %s3031
      $region68: #{net_forward.1} parent=63 // pred_fallthru
        _
    $region64: #{net_forward.1} parent=5 // pred_fallthru
      _
  $region6: #{net_forward.1} parent=0 // loop_footer
    %s19 = sadd.s32 1, %s15
  $region7: #{net_forward.1} parent=0 // loop_footer_branch
    %14 = sbr.rel target = $region3
  $region8: #{net_forward.1} parent=0 // loop_exit
    _

</llo_original>
